<compile_context>
chip_gen: v7x
topology: tpu7x:2x2x1
jax: 0.10.0
libtpu: 0.0.40
codegen_flags: <defaults>
</compile_context>

<pallas_src>
import functools

import jax
import jax.numpy as jnp
import numpy as np
from jax.experimental import pallas as pl
from jax.experimental.pallas import tpu as pltpu

_BN_EPS = 1e-5
_EDGE_CHUNK = 512


def _vmem_spec():
    return pl.BlockSpec(memory_space=pltpu.MemorySpace.VMEM)


# ----------------------------------------------------------------------------
# Fused kernel: (A+I) build (edge-chunked, bf16 one-hots) -> L x (agg + MLP with
# folded BN) -> global_add_pool -> final Linear.  Everything VMEM-resident.
# ----------------------------------------------------------------------------
def _gin_fused_kernel(x_ref, src_ref, dst_ref, batch_ref,
                      w1_0_ref, wmats_ref, vecs_ref, wlin_ref, blin_ref,
                      out_ref, adj_ref,
                      *, num_layers, num_graphs, edge_chunk):
    n_nodes = x_ref.shape[0]
    n_edges_pad = src_ref.shape[0]

    # ---- Build (A + I) once, accumulated over edge chunks into VMEM scratch.
    # Identity init folds the GIN self term (eps = 0):
    #   h_i = (1+eps)*x_i + sum_{j->i} x_j == ((A + I) @ x)_i
    row = jax.lax.broadcasted_iota(jnp.int32, (n_nodes, n_nodes), 0)
    col = jax.lax.broadcasted_iota(jnp.int32, (n_nodes, n_nodes), 1)
    adj_ref[...] = (row == col).astype(jnp.float32)

    num_chunks = n_edges_pad // edge_chunk
    for c in range(num_chunks):                                    # static unroll
        s = src_ref[c * edge_chunk:(c + 1) * edge_chunk, :]        # [Ec, 1] int32
        d = dst_ref[:, c * edge_chunk:(c + 1) * edge_chunk]        # [1, Ec] int32
        # Padded edges carry index -1 -> never match the iota -> no contribution.
        onehot_src = (jax.lax.broadcasted_iota(
            jnp.int32, (edge_chunk, n_nodes), 1) == s).astype(jnp.bfloat16)   # [Ec,N]
        onehot_dst_t = (jax.lax.broadcasted_iota(
            jnp.int32, (n_nodes, edge_chunk), 0) == d).astype(jnp.bfloat16)   # [N,Ec]
        adj_ref[...] += jnp.dot(onehot_dst_t, onehot_src,
                                preferred_element_type=jnp.float32)

    adj_plus_i = adj_ref[...]                                      # [N, N] f32
    vecs = vecs_ref[...]                                           # [6L, H] f32

    x = x_ref[...]                                                 # [N, Cin] f32
    for k in range(num_layers):                                    # static unroll
        w1 = w1_0_ref[...] if k == 0 else wmats_ref[k - 1]
        w2 = wmats_ref[(num_layers - 1) + k]
        b1 = vecs[6 * k + 0:6 * k + 1, :]
        s1 = vecs[6 * k + 1:6 * k + 2, :]
        t1 = vecs[6 * k + 2:6 * k + 3, :]
        b2 = vecs[6 * k + 3:6 * k + 4, :]
        s2 = vecs[6 * k + 4:6 * k + 5, :]
        t2 = vecs[6 * k + 5:6 * k + 6, :]
        # Aggregation + self term in one MXU matmul.
        h = jnp.dot(adj_plus_i, x, preferred_element_type=jnp.float32)
        # MLP: Linear -> ReLU -> BN(affine) -> Linear -> ReLU -> BN(affine)
        h = jnp.maximum(jnp.dot(h, w1, preferred_element_type=jnp.float32) + b1, 0.0)
        h = h * s1 + t1
        h = jnp.maximum(jnp.dot(h, w2, preferred_element_type=jnp.float32) + b2, 0.0)
        x = h * s2 + t2   # s2/t2 already compose the inter-layer BN (inference)
        # TODO(synk): F.dropout(training=True) needs in-kernel PRNG; identity at inference.

    # global_add_pool via graph-membership one-hot matmul (built once; tiny [B,N]).
    member = (jax.lax.broadcasted_iota(jnp.int32, (num_graphs, n_nodes), 0)
              == batch_ref[...]).astype(jnp.float32)               # [B, N]
    pooled = jnp.dot(member, x, preferred_element_type=jnp.float32)  # [B, H]
    out_ref[...] = (jnp.dot(pooled, wlin_ref[...],
                            preferred_element_type=jnp.float32) + blin_ref[...])


def gin_forward(params, x, edge_index, batch, *, num_graphs, edge_chunk=_EDGE_CHUNK):
    num_layers = len(params["convs"])
    n_nodes, num_feat = x.shape
    hidden = params["convs"][0]["w2"].shape[0]
    num_targets = params["lin"]["w"].shape[1]

    # --- pad edge list to a multiple of edge_chunk (pad index -1 = no-op edge) ---
    n_edges = edge_index.shape[1]
    n_edges_pad = max(edge_chunk, -(-n_edges // edge_chunk) * edge_chunk)
    pad = n_edges_pad - n_edges
    src = jnp.concatenate([edge_index[0].astype(jnp.int32),
                           jnp.full((pad,), -1, jnp.int32)]).reshape(-1, 1)   # [Ep,1]
    dst = jnp.concatenate([edge_index[1].astype(jnp.int32),
                           jnp.full((pad,), -1, jnp.int32)]).reshape(1, -1)   # [1,Ep]
    batch_row = batch.astype(jnp.int32).reshape(1, -1)                        # [1,N]

    def bn_fold(bn):
        scale = bn["gamma"] / jnp.sqrt(bn["var"] + _BN_EPS)
        return scale, bn["beta"] - bn["mean"] * scale

    # Pack parameters: layer-0 W1 separate (Cin differs), one [2L-1,H,H] stack
    # for the remaining square matrices, one [6L,H] stack for per-channel vectors.
    wmats_list, vecs_list = [], []
    for k, conv in enumerate(params["convs"]):
        s1, t1 = bn_fold(conv["bn1"])
        s2, t2 = bn_fold(conv["bn2"])
        if k < num_layers - 1:
            # TODO(synk): training-mode BN uses batch stats; running stats folded here.
            so, to = bn_fold(params["bns"][k])
            s2, t2 = s2 * so, t2 * so + to
        if k > 0:
            wmats_list.append(conv["w1"])
        vecs_list += [conv["b1"], s1, t1, conv["b2"], s2, t2]
    wmats_list += [conv["w2"] for conv in params["convs"]]
    wmats = jnp.stack(wmats_list, axis=0)                # [2L-1, H, H]
    vecs = jnp.concatenate(vecs_list, axis=0)            # [6L, H]
    w1_0 = params["convs"][0]["w1"]                      # [Cin, H]
    wlin, blin = params["lin"]["w"], params["lin"]["b"]  # [H, T], [1, T]

    # ---- Cost estimate + explicit VMEM budget ----
    flops = 2 * n_edges_pad * n_nodes * n_nodes
    c_in = num_feat
    for _ in range(num_layers):
        flops += (2 * n_nodes * n_nodes * c_in + 2 * n_nodes * c_in * hidden
                  + 2 * n_nodes * hidden * hidden)
        c_in = hidden
    flops += 2 * num_graphs * n_nodes * hidden + 2 * num_graphs * hidden * num_targets
    param_bytes = 4 * int(w1_0.size + wmats.size + vecs.size + wlin.size + blin.size)
    io_bytes = (4 * int(x.size) + 4 * int(src.size + dst.size + batch_row.size)
                + param_bytes + 4 * num_graphs * num_targets)
    cost = pl.CostEstimate(flops=int(flops), transcendentals=0,
                           bytes_accessed=int(io_bytes))

    resident = (4 * n_nodes * n_nodes                     # (A+I) scratch, f32
                + 2 * 2 * edge_chunk * n_nodes            # two bf16 one-hot chunks
                + 4 * n_nodes * max(num_feat, hidden) * 4 # x + intermediates headroom
                + 2 * param_bytes + (4 << 20))
    vmem_limit = int(min(max(resident, 32 << 20), 64 << 20))   # cap for v7x (64 MiB)

    kernel = functools.partial(_gin_fused_kernel, num_layers=num_layers,
                               num_graphs=num_graphs, edge_chunk=edge_chunk)
    return pl.pallas_call(
        kernel,
        out_shape=jax.ShapeDtypeStruct((num_graphs, num_targets), jnp.float32),
        in_specs=[_vmem_spec() for _ in range(9)],
        out_specs=_vmem_spec(),
        scratch_shapes=[pltpu.VMEM((n_nodes, n_nodes), jnp.float32)],
        compiler_params=pltpu.CompilerParams(vmem_limit_bytes=vmem_limit),
        cost_estimate=cost,
    )(x, src, dst, batch_row, w1_0, wmats, vecs, wlin, blin)


# ----------------------------------------------------------------------------
# Parameter init (matches nn.Module shapes; BN carries gamma/beta/mean/var).
# Weights stored pre-transposed ([in, out]) so kernel does plain A @ W.
# ----------------------------------------------------------------------------
def init_params(key, num_node_features, hidden, num_targets, num_layers):
    def bn_init(k, n):
        k1, k2, k3, k4 = jax.random.split(k, 4)
        return {
            "gamma": 1.0 + 0.1 * jax.random.normal(k1, (1, n), jnp.float32),
            "beta": 0.1 * jax.random.normal(k2, (1, n), jnp.float32),
            "mean": 0.1 * jax.random.normal(k3, (1, n), jnp.float32),
            "var": jnp.abs(1.0 + 0.1 * jax.random.normal(k4, (1, n), jnp.float32)),
        }

    params = {"convs": [], "bns": []}
    c_in = num_node_features
    for _ in range(num_layers):
        key, k1, k2, k3, k4, k5, k6 = jax.random.split(key, 7)
        params["convs"].append({
            "w1": 0.2 * jax.random.normal(k1, (c_in, hidden), jnp.float32),
            "b1": 0.05 * jax.random.normal(k2, (1, hidden), jnp.float32),
            "bn1": bn_init(k3, hidden),
            "w2": 0.2 * jax.random.normal(k4, (hidden, hidden), jnp.float32),
            "b2": 0.05 * jax.random.normal(k5, (1, hidden), jnp.float32),
            "bn2": bn_init(k6, hidden),
        })
        c_in = hidden
    for _ in range(num_layers - 1):
        key, kb = jax.random.split(key)
        params["bns"].append(bn_init(kb, hidden))
    key, k1, k2 = jax.random.split(key, 3)
    params["lin"] = {
        "w": 0.2 * jax.random.normal(k1, (hidden, num_targets), jnp.float32),
        "b": 0.05 * jax.random.normal(k2, (1, num_targets), jnp.float32),
    }
    return params


# Pure-JAX reference (segment ops instead of one-hot matmuls).
def gin_reference(params, x, edge_index, batch, num_graphs):
    src, dst = edge_index[0], edge_index[1]
    num_layers = len(params["convs"])

    def bn_apply(bn, h):
        scale = bn["gamma"] / jnp.sqrt(bn["var"] + _BN_EPS)
        return (h - bn["mean"]) * scale + bn["beta"]

    for k, conv in enumerate(params["convs"]):
        agg = jax.ops.segment_sum(x[src], dst, num_segments=x.shape[0])
        h = x + agg
        h = jax.nn.relu(h @ conv["w1"] + conv["b1"])
        h = bn_apply(conv["bn1"], h)
        h = jax.nn.relu(h @ conv["w2"] + conv["b2"])
        h = bn_apply(conv["bn2"], h)
        if k < num_layers - 1:
            h = bn_apply(params["bns"][k], h)
        x = h  # dropout identity at inference
    pooled = jax.ops.segment_sum(x, batch, num_segments=num_graphs)
    return pooled @ params["lin"]["w"] + params["lin"]["b"]


if __name__ == "__main__":
    num_node_features, hidden, num_targets, num_layers = 8, 32, 3, 3
    n_nodes, n_graphs, edges_per_graph = 16, 2, 20

    key = jax.random.PRNGKey(0)
    kp, kx, ks0, kd0, ks1, kd1 = jax.random.split(key, 6)
    params = init_params(kp, num_node_features, hidden, num_targets, num_layers)

    x = jax.random.normal(kx, (n_nodes, num_node_features), jnp.float32)
    src = jnp.concatenate([jax.random.randint(ks0, (edges_per_graph,), 0, 8),
                           jax.random.randint(ks1, (edges_per_graph,), 8, 16)])
    dst = jnp.concatenate([jax.random.randint(kd0, (edges_per_graph,), 0, 8),
                           jax.random.randint(kd1, (edges_per_graph,), 8, 16)])
    edge_index = jnp.stack([src, dst]).astype(jnp.int32)             # [2, E]
    batch = jnp.concatenate([jnp.zeros(8, jnp.int32), jnp.ones(8, jnp.int32)])

    out = gin_forward(params, x, edge_index, batch, num_graphs=n_graphs)
    out = jax.block_until_ready(out)

    ref = gin_reference(params, x, edge_index, batch, n_graphs)
    np.testing.assert_allclose(np.asarray(out), np.asarray(ref),
                               rtol=2e-2, atol=2e-2)
    print("KERNEL_OK")
</pallas_src>

<mosaic_0001>
module attributes {stable_mosaic.version = 11 : i64} {
  func.func @_gin_fused_kernel(%arg0: memref<16x8xf32, #tpu.memory_space<vmem>>, %arg1: memref<512x1xi32, #tpu.memory_space<vmem>>, %arg2: memref<1x512xi32, #tpu.memory_space<vmem>>, %arg3: memref<1x16xi32, #tpu.memory_space<vmem>>, %arg4: memref<8x32xf32, #tpu.memory_space<vmem>>, %arg5: memref<5x32x32xf32, #tpu.memory_space<vmem>>, %arg6: memref<18x32xf32, #tpu.memory_space<vmem>>, %arg7: memref<32x3xf32, #tpu.memory_space<vmem>>, %arg8: memref<1x3xf32, #tpu.memory_space<vmem>>, %arg9: memref<2x3xf32, #tpu.memory_space<vmem>>, %arg10: memref<16x16xf32, #tpu.memory_space<vmem>>) attributes {dimension_semantics = [], scalar_prefetch = 0 : i64, scratch_operands = 1 : i64, tpu.core_type = #tpu.core_type<tc>} {
    %0 = tpu.iota {dimensions = array<i32: 0>} : vector<16x16xi32>
    %1 = tpu.iota {dimensions = array<i32: 1>} : vector<16x16xi32>
    %2 = arith.cmpi eq, %0, %1 : vector<16x16xi32>
    %3 = arith.extui %2 : vector<16x16xi1> to vector<16x16xi32>
    %4 = arith.sitofp %3 : vector<16x16xi32> to vector<16x16xf32>
    %c0 = arith.constant 0 : index
    %c0_0 = arith.constant 0 : index
    %5 = vector.load %arg10[%c0, %c0_0] : memref<16x16xf32, #tpu.memory_space<vmem>>, vector<16x16xf32>
    tpu.vector_store %arg10[%c0, %c0_0], %4 {strides = array<i32>} : memref<16x16xf32, #tpu.memory_space<vmem>>, vector<16x16xf32>,
    %c0_1 = arith.constant 0 : index
    %c0_2 = arith.constant 0 : index
    %6 = vector.load %arg1[%c0_1, %c0_2] : memref<512x1xi32, #tpu.memory_space<vmem>>, vector<512x1xi32>
    %c0_3 = arith.constant 0 : index
    %c0_4 = arith.constant 0 : index
    %7 = vector.load %arg2[%c0_3, %c0_4] : memref<1x512xi32, #tpu.memory_space<vmem>>, vector<1x512xi32>
    %8 = tpu.iota {dimensions = array<i32: 1>} : vector<512x16xi32>
    %9 = vector.broadcast %6 : vector<512x1xi32> to vector<512x16xi32>
    %10 = arith.cmpi eq, %8, %9 : vector<512x16xi32>
    %11 = arith.extui %10 : vector<512x16xi1> to vector<512x16xi32>
    %12 = arith.sitofp %11 : vector<512x16xi32> to vector<512x16xf32>
    %13 = arith.truncf %12 : vector<512x16xf32> to vector<512x16xbf16>
    %14 = tpu.iota {dimensions = array<i32: 0>} : vector<16x512xi32>
    %15 = vector.broadcast %7 : vector<1x512xi32> to vector<16x512xi32>
    %16 = arith.cmpi eq, %14, %15 : vector<16x512xi32>
    %17 = arith.extui %16 : vector<16x512xi1> to vector<16x512xi32>
    %18 = arith.sitofp %17 : vector<16x512xi32> to vector<16x512xf32>
    %19 = arith.truncf %18 : vector<16x512xf32> to vector<16x512xbf16>
    %c0_5 = arith.constant 0 : index
    %c0_6 = arith.constant 0 : index
    %20 = vector.load %arg10[%c0_5, %c0_6] : memref<16x16xf32, #tpu.memory_space<vmem>>, vector<16x16xf32>
    %cst = arith.constant dense<0.000000e+00> : vector<16x16xf32>
    %21 = tpu.matmul %19, %13, %cst {dimension_numbers = #tpu.dot_dimension_numbers<[1], [0], [0], [1], [0, 0, 1, 1], [], []>} : vector<16x512xbf16>, vector<512x16xbf16>, vector<16x16xf32> -> vector<16x16xf32>
    %22 = arith.addf %20, %21 : vector<16x16xf32>
    %c0_7 = arith.constant 0 : index
    %c0_8 = arith.constant 0 : index
    %23 = vector.load %arg10[%c0_7, %c0_8] : memref<16x16xf32, #tpu.memory_space<vmem>>, vector<16x16xf32>
    tpu.vector_store %arg10[%c0_7, %c0_8], %22 {strides = array<i32>} : memref<16x16xf32, #tpu.memory_space<vmem>>, vector<16x16xf32>,
    %c0_9 = arith.constant 0 : index
    %c0_10 = arith.constant 0 : index
    %24 = vector.load %arg10[%c0_9, %c0_10] : memref<16x16xf32, #tpu.memory_space<vmem>>, vector<16x16xf32>
    %c0_11 = arith.constant 0 : index
    %c0_12 = arith.constant 0 : index
    %25 = vector.load %arg6[%c0_11, %c0_12] : memref<18x32xf32, #tpu.memory_space<vmem>>, vector<18x32xf32>
    %c0_13 = arith.constant 0 : index
    %c0_14 = arith.constant 0 : index
    %26 = vector.load %arg0[%c0_13, %c0_14] : memref<16x8xf32, #tpu.memory_space<vmem>>, vector<16x8xf32>
    %c0_15 = arith.constant 0 : index
    %c0_16 = arith.constant 0 : index
    %27 = vector.load %arg4[%c0_15, %c0_16] : memref<8x32xf32, #tpu.memory_space<vmem>>, vector<8x32xf32>
    %c2 = arith.constant 2 : index
    %c0_17 = arith.constant 0 : index
    %c0_18 = arith.constant 0 : index
    %28 = vector.load %arg5[%c2, %c0_17, %c0_18] : memref<5x32x32xf32, #tpu.memory_space<vmem>>, vector<1x32x32xf32>
    %29 = vector.shape_cast %28 : vector<1x32x32xf32> to vector<32x32xf32>
    %30 = vector.extract_strided_slice %25 {offsets = [0, 0], sizes = [1, 32], strides = [1, 1]} : vector<18x32xf32> to vector<1x32xf32>
    %31 = vector.extract_strided_slice %25 {offsets = [1, 0], sizes = [1, 32], strides = [1, 1]} : vector<18x32xf32> to vector<1x32xf32>
    %32 = vector.extract_strided_slice %25 {offsets = [2, 0], sizes = [1, 32], strides = [1, 1]} : vector<18x32xf32> to vector<1x32xf32>
    %33 = vector.extract_strided_slice %25 {offsets = [3, 0], sizes = [1, 32], strides = [1, 1]} : vector<18x32xf32> to vector<1x32xf32>
    %34 = vector.extract_strided_slice %25 {offsets = [4, 0], sizes = [1, 32], strides = [1, 1]} : vector<18x32xf32> to vector<1x32xf32>
    %35 = vector.extract_strided_slice %25 {offsets = [5, 0], sizes = [1, 32], strides = [1, 1]} : vector<18x32xf32> to vector<1x32xf32>
    %cst_19 = arith.constant dense<0.000000e+00> : vector<16x8xf32>
    %36 = tpu.matmul %24, %26, %cst_19 {dimension_numbers = #tpu.dot_dimension_numbers<[1], [0], [0], [1], [0, 0, 1, 1], [], []>} : vector<16x16xf32>, vector<16x8xf32>, vector<16x8xf32> -> vector<16x8xf32>
    %cst_20 = arith.constant dense<0.000000e+00> : vector<16x32xf32>
    %37 = tpu.matmul %36, %27, %cst_20 {dimension_numbers = #tpu.dot_dimension_numbers<[1], [0], [0], [1], [0, 0, 1, 1], [], []>} : vector<16x8xf32>, vector<8x32xf32>, vector<16x32xf32> -> vector<16x32xf32>
    %38 = vector.broadcast %30 : vector<1x32xf32> to vector<16x32xf32>
    %39 = arith.addf %37, %38 : vector<16x32xf32>
    %cst_21 = arith.constant 0.000000e+00 : f32
    %40 = vector.broadcast %cst_21 : f32 to vector<16x32xf32>
    %41 = arith.maximumf %39, %40 : vector<16x32xf32>
    %42 = vector.broadcast %31 : vector<1x32xf32> to vector<16x32xf32>
    %43 = arith.mulf %41, %42 : vector<16x32xf32>
    %44 = vector.broadcast %32 : vector<1x32xf32> to vector<16x32xf32>
    %45 = arith.addf %43, %44 : vector<16x32xf32>
    %cst_22 = arith.constant dense<0.000000e+00> : vector<16x32xf32>
    %46 = tpu.matmul %45, %29, %cst_22 {dimension_numbers = #tpu.dot_dimension_numbers<[1], [0], [0], [1], [0, 0, 1, 1], [], []>} : vector<16x32xf32>, vector<32x32xf32>, vector<16x32xf32> -> vector<16x32xf32>
    %47 = vector.broadcast %33 : vector<1x32xf32> to vector<16x32xf32>
    %48 = arith.addf %46, %47 : vector<16x32xf32>
    %cst_23 = arith.constant 0.000000e+00 : f32
    %49 = vector.broadcast %cst_23 : f32 to vector<16x32xf32>
    %50 = arith.maximumf %48, %49 : vector<16x32xf32>
    %51 = vector.broadcast %34 : vector<1x32xf32> to vector<16x32xf32>
    %52 = arith.mulf %50, %51 : vector<16x32xf32>
    %53 = vector.broadcast %35 : vector<1x32xf32> to vector<16x32xf32>
    %54 = arith.addf %52, %53 : vector<16x32xf32>
    %c0_24 = arith.constant 0 : index
    %c0_25 = arith.constant 0 : index
    %c0_26 = arith.constant 0 : index
    %55 = vector.load %arg5[%c0_24, %c0_25, %c0_26] : memref<5x32x32xf32, #tpu.memory_space<vmem>>, vector<1x32x32xf32>
    %56 = vector.shape_cast %55 : vector<1x32x32xf32> to vector<32x32xf32>
    %c3 = arith.constant 3 : index
    %c0_27 = arith.constant 0 : index
    %c0_28 = arith.constant 0 : index
    %57 = vector.load %arg5[%c3, %c0_27, %c0_28] : memref<5x32x32xf32, #tpu.memory_space<vmem>>, vector<1x32x32xf32>
    %58 = vector.shape_cast %57 : vector<1x32x32xf32> to vector<32x32xf32>
    %59 = vector.extract_strided_slice %25 {offsets = [6, 0], sizes = [1, 32], strides = [1, 1]} : vector<18x32xf32> to vector<1x32xf32>
    %60 = vector.extract_strided_slice %25 {offsets = [7, 0], sizes = [1, 32], strides = [1, 1]} : vector<18x32xf32> to vector<1x32xf32>
    %61 = vector.extract_strided_slice %25 {offsets = [8, 0], sizes = [1, 32], strides = [1, 1]} : vector<18x32xf32> to vector<1x32xf32>
    %62 = vector.extract_strided_slice %25 {offsets = [9, 0], sizes = [1, 32], strides = [1, 1]} : vector<18x32xf32> to vector<1x32xf32>
    %63 = vector.extract_strided_slice %25 {offsets = [10, 0], sizes = [1, 32], strides = [1, 1]} : vector<18x32xf32> to vector<1x32xf32>
    %64 = vector.extract_strided_slice %25 {offsets = [11, 0], sizes = [1, 32], strides = [1, 1]} : vector<18x32xf32> to vector<1x32xf32>
    %cst_29 = arith.constant dense<0.000000e+00> : vector<16x32xf32>
    %65 = tpu.matmul %24, %54, %cst_29 {dimension_numbers = #tpu.dot_dimension_numbers<[1], [0], [0], [1], [0, 0, 1, 1], [], []>} : vector<16x16xf32>, vector<16x32xf32>, vector<16x32xf32> -> vector<16x32xf32>
    %cst_30 = arith.constant dense<0.000000e+00> : vector<16x32xf32>
    %66 = tpu.matmul %65, %56, %cst_30 {dimension_numbers = #tpu.dot_dimension_numbers<[1], [0], [0], [1], [0, 0, 1, 1], [], []>} : vector<16x32xf32>, vector<32x32xf32>, vector<16x32xf32> -> vector<16x32xf32>
    %67 = vector.broadcast %59 : vector<1x32xf32> to vector<16x32xf32>
    %68 = arith.addf %66, %67 : vector<16x32xf32>
    %cst_31 = arith.constant 0.000000e+00 : f32
    %69 = vector.broadcast %cst_31 : f32 to vector<16x32xf32>
    %70 = arith.maximumf %68, %69 : vector<16x32xf32>
    %71 = vector.broadcast %60 : vector<1x32xf32> to vector<16x32xf32>
    %72 = arith.mulf %70, %71 : vector<16x32xf32>
    %73 = vector.broadcast %61 : vector<1x32xf32> to vector<16x32xf32>
    %74 = arith.addf %72, %73 : vector<16x32xf32>
    %cst_32 = arith.constant dense<0.000000e+00> : vector<16x32xf32>
    %75 = tpu.matmul %74, %58, %cst_32 {dimension_numbers = #tpu.dot_dimension_numbers<[1], [0], [0], [1], [0, 0, 1, 1], [], []>} : vector<16x32xf32>, vector<32x32xf32>, vector<16x32xf32> -> vector<16x32xf32>
    %76 = vector.broadcast %62 : vector<1x32xf32> to vector<16x32xf32>
    %77 = arith.addf %75, %76 : vector<16x32xf32>
    %cst_33 = arith.constant 0.000000e+00 : f32
    %78 = vector.broadcast %cst_33 : f32 to vector<16x32xf32>
    %79 = arith.maximumf %77, %78 : vector<16x32xf32>
    %80 = vector.broadcast %63 : vector<1x32xf32> to vector<16x32xf32>
    %81 = arith.mulf %79, %80 : vector<16x32xf32>
    %82 = vector.broadcast %64 : vector<1x32xf32> to vector<16x32xf32>
    %83 = arith.addf %81, %82 : vector<16x32xf32>
    %c1 = arith.constant 1 : index
    %c0_34 = arith.constant 0 : index
    %c0_35 = arith.constant 0 : index
    %84 = vector.load %arg5[%c1, %c0_34, %c0_35] : memref<5x32x32xf32, #tpu.memory_space<vmem>>, vector<1x32x32xf32>
    %85 = vector.shape_cast %84 : vector<1x32x32xf32> to vector<32x32xf32>
    %c4 = arith.constant 4 : index
    %c0_36 = arith.constant 0 : index
    %c0_37 = arith.constant 0 : index
    %86 = vector.load %arg5[%c4, %c0_36, %c0_37] : memref<5x32x32xf32, #tpu.memory_space<vmem>>, vector<1x32x32xf32>
    %87 = vector.shape_cast %86 : vector<1x32x32xf32> to vector<32x32xf32>
    %88 = vector.extract_strided_slice %25 {offsets = [12, 0], sizes = [1, 32], strides = [1, 1]} : vector<18x32xf32> to vector<1x32xf32>
    %89 = vector.extract_strided_slice %25 {offsets = [13, 0], sizes = [1, 32], strides = [1, 1]} : vector<18x32xf32> to vector<1x32xf32>
    %90 = vector.extract_strided_slice %25 {offsets = [14, 0], sizes = [1, 32], strides = [1, 1]} : vector<18x32xf32> to vector<1x32xf32>
    %91 = vector.extract_strided_slice %25 {offsets = [15, 0], sizes = [1, 32], strides = [1, 1]} : vector<18x32xf32> to vector<1x32xf32>
    %92 = vector.extract_strided_slice %25 {offsets = [16, 0], sizes = [1, 32], strides = [1, 1]} : vector<18x32xf32> to vector<1x32xf32>
    %93 = vector.extract_strided_slice %25 {offsets = [17, 0], sizes = [1, 32], strides = [1, 1]} : vector<18x32xf32> to vector<1x32xf32>
    %cst_38 = arith.constant dense<0.000000e+00> : vector<16x32xf32>
    %94 = tpu.matmul %24, %83, %cst_38 {dimension_numbers = #tpu.dot_dimension_numbers<[1], [0], [0], [1], [0, 0, 1, 1], [], []>} : vector<16x16xf32>, vector<16x32xf32>, vector<16x32xf32> -> vector<16x32xf32>
    %cst_39 = arith.constant dense<0.000000e+00> : vector<16x32xf32>
    %95 = tpu.matmul %94, %85, %cst_39 {dimension_numbers = #tpu.dot_dimension_numbers<[1], [0], [0], [1], [0, 0, 1, 1], [], []>} : vector<16x32xf32>, vector<32x32xf32>, vector<16x32xf32> -> vector<16x32xf32>
    %96 = vector.broadcast %88 : vector<1x32xf32> to vector<16x32xf32>
    %97 = arith.addf %95, %96 : vector<16x32xf32>
    %cst_40 = arith.constant 0.000000e+00 : f32
    %98 = vector.broadcast %cst_40 : f32 to vector<16x32xf32>
    %99 = arith.maximumf %97, %98 : vector<16x32xf32>
    %100 = vector.broadcast %89 : vector<1x32xf32> to vector<16x32xf32>
    %101 = arith.mulf %99, %100 : vector<16x32xf32>
    %102 = vector.broadcast %90 : vector<1x32xf32> to vector<16x32xf32>
    %103 = arith.addf %101, %102 : vector<16x32xf32>
    %cst_41 = arith.constant dense<0.000000e+00> : vector<16x32xf32>
    %104 = tpu.matmul %103, %87, %cst_41 {dimension_numbers = #tpu.dot_dimension_numbers<[1], [0], [0], [1], [0, 0, 1, 1], [], []>} : vector<16x32xf32>, vector<32x32xf32>, vector<16x32xf32> -> vector<16x32xf32>
    %105 = vector.broadcast %91 : vector<1x32xf32> to vector<16x32xf32>
    %106 = arith.addf %104, %105 : vector<16x32xf32>
    %cst_42 = arith.constant 0.000000e+00 : f32
    %107 = vector.broadcast %cst_42 : f32 to vector<16x32xf32>
    %108 = arith.maximumf %106, %107 : vector<16x32xf32>
    %109 = vector.broadcast %92 : vector<1x32xf32> to vector<16x32xf32>
    %110 = arith.mulf %108, %109 : vector<16x32xf32>
    %111 = vector.broadcast %93 : vector<1x32xf32> to vector<16x32xf32>
    %112 = arith.addf %110, %111 : vector<16x32xf32>
    %113 = tpu.iota {dimensions = array<i32: 0>} : vector<2x16xi32>
    %c0_43 = arith.constant 0 : index
    %c0_44 = arith.constant 0 : index
    %114 = vector.load %arg3[%c0_43, %c0_44] : memref<1x16xi32, #tpu.memory_space<vmem>>, vector<1x16xi32>
    %115 = vector.broadcast %114 : vector<1x16xi32> to vector<2x16xi32>
    %116 = arith.cmpi eq, %113, %115 : vector<2x16xi32>
    %117 = arith.extui %116 : vector<2x16xi1> to vector<2x16xi32>
    %118 = arith.sitofp %117 : vector<2x16xi32> to vector<2x16xf32>
    %cst_45 = arith.constant dense<0.000000e+00> : vector<2x32xf32>
    %119 = tpu.matmul %118, %112, %cst_45 {dimension_numbers = #tpu.dot_dimension_numbers<[1], [0], [0], [1], [0, 0, 1, 1], [], []>} : vector<2x16xf32>, vector<16x32xf32>, vector<2x32xf32> -> vector<2x32xf32>
    %c0_46 = arith.constant 0 : index
    %c0_47 = arith.constant 0 : index
    %120 = vector.load %arg7[%c0_46, %c0_47] : memref<32x3xf32, #tpu.memory_space<vmem>>, vector<32x3xf32>
    %cst_48 = arith.constant dense<0.000000e+00> : vector<2x3xf32>
    %121 = tpu.matmul %119, %120, %cst_48 {dimension_numbers = #tpu.dot_dimension_numbers<[1], [0], [0], [1], [0, 0, 1, 1], [], []>} : vector<2x32xf32>, vector<32x3xf32>, vector<2x3xf32> -> vector<2x3xf32>
    %c0_49 = arith.constant 0 : index
    %c0_50 = arith.constant 0 : index
    %122 = vector.load %arg8[%c0_49, %c0_50] : memref<1x3xf32, #tpu.memory_space<vmem>>, vector<1x3xf32>
    %123 = vector.broadcast %122 : vector<1x3xf32> to vector<2x3xf32>
    %124 = arith.addf %121, %123 : vector<2x3xf32>
    %c0_51 = arith.constant 0 : index
    %c0_52 = arith.constant 0 : index
    %125 = vector.load %arg9[%c0_51, %c0_52] : memref<2x3xf32, #tpu.memory_space<vmem>>, vector<2x3xf32>
    tpu.vector_store %arg9[%c0_51, %c0_52], %124 {strides = array<i32>} : memref<2x3xf32, #tpu.memory_space<vmem>>, vector<2x3xf32>,
    return
  }
}

</mosaic_0001>

<llo_original>
// kernel: tpu_custom_call.1
$region0: #{tpu_custom_call.1}
  #allocation0 [shape = 'u32[]', space=smem, size = 0x4, offset = 0x4, fixed_abs, tag = 'smem constant byte address 0x4 - core index']
  #allocation1 [shape = 'u32[144,128]{1,0:T(1,128)}', space=vmem, size = 0x12000, scoped, tag = 'internal scratch']
  #allocation2 [shape = 'f32[16,16]{1,0:T(8,128)}', space=vmem, size = 0x2000, scoped, tag = 'scratch operand']
  %s0 = inlined_call_operand.vmem [shape: f32[16,8], index: 0, kind: input, shape index: {}]
  %s1 = inlined_call_operand.vmem [shape: s32[512,1], index: 1, kind: input, shape index: {}]
  %s2 = inlined_call_operand.vmem [shape: s32[1,512], index: 2, kind: input, shape index: {}]
  %s3 = inlined_call_operand.vmem [shape: s32[1,16], index: 3, kind: input, shape index: {}]
  %s4 = inlined_call_operand.vmem [shape: f32[8,32], index: 4, kind: input, shape index: {}]
  %s5 = inlined_call_operand.vmem [shape: f32[5,32,32], index: 5, kind: input, shape index: {}]
  %s6 = inlined_call_operand.vmem [shape: f32[18,32], index: 6, kind: input, shape index: {}]
  %s7 = inlined_call_operand.vmem [shape: f32[32,3], index: 7, kind: input, shape index: {}]
  %s8 = inlined_call_operand.vmem [shape: f32[1,3], index: 8, kind: input, shape index: {}]
  %s9 = inlined_call_operand.hbm [shape: f32[2,3], index: 9, kind: output, shape index: {}]
  %s10 = sld [smem:[#allocation0]]
  $region46: #{tpu_custom_call.1} parent=0
    _
  %s12 = ssub.s32 1, %s10
  %s13 = scalar_select 0, %s12, %s10
  $region1: #{tpu_custom_call.1} parent=0
    #allocation3 [shape = 'u8[1024]{0}', space=vmem, size = 0x400, scoped, tag = 'output window, operand 0, single buffered']
    #allocation4 [shape = 's32[1]{0}', space=sflag, size = 0x4, scoped, tag = 'scoped memory for tpu_custom_call.1']
    %14 = vsyncpa [#allocation4], 0
    // Predicated region
    $region2: #{tpu_custom_call.1} parent=1 // pred_check
      _
    $region3: #{tpu_custom_call.1} parent=1 // pred_check_branch
      %16 = sbr.rel (0) target = $region5
    $region4: #{tpu_custom_call.1} parent=1 // pred_region
      _
    $region5: #{tpu_custom_call.1} parent=1 // pred_fallthru
      _
    // Predicated region
    $region6: #{tpu_custom_call.1} parent=1 // pred_check
      _
    $region7: #{tpu_custom_call.1} parent=1 // pred_check_branch
      %18 = sbr.rel (0) target = $region9
    $region8: #{tpu_custom_call.1} parent=1 // pred_region
      _
    $region9: #{tpu_custom_call.1} parent=1 // pred_fallthru
      _
    // Predicated region
    $region10: #{tpu_custom_call.1} parent=1 // pred_check
      _
    $region11: #{tpu_custom_call.1} parent=1 // pred_check_branch
      %20 = sbr.rel (0) target = $region13
    $region12: #{tpu_custom_call.1} parent=1 // pred_region
      _
    $region13: #{tpu_custom_call.1} parent=1 // pred_fallthru
      _
    // Predicated region
    $region14: #{tpu_custom_call.1} parent=1 // pred_check
      _
    $region15: #{tpu_custom_call.1} parent=1 // pred_check_branch
      %22 = sbr.rel (0) target = $region17
    $region16: #{tpu_custom_call.1} parent=1 // pred_region
      _
    $region17: #{tpu_custom_call.1} parent=1 // pred_fallthru
      _
    // Predicated region
    $region18: #{tpu_custom_call.1} parent=1 // pred_check
      _
    $region19: #{tpu_custom_call.1} parent=1 // pred_check_branch
      %24 = sbr.rel (0) target = $region21
    $region20: #{tpu_custom_call.1} parent=1 // pred_region
      _
    $region21: #{tpu_custom_call.1} parent=1 // pred_fallthru
      _
    // Predicated region
    $region22: #{tpu_custom_call.1} parent=1 // pred_check
      _
    $region23: #{tpu_custom_call.1} parent=1 // pred_check_branch
      %26 = sbr.rel (0) target = $region25
    $region24: #{tpu_custom_call.1} parent=1 // pred_region
      _
    $region25: #{tpu_custom_call.1} parent=1 // pred_fallthru
      _
    // Predicated region
    $region26: #{tpu_custom_call.1} parent=1 // pred_check
      _
    $region27: #{tpu_custom_call.1} parent=1 // pred_check_branch
      %28 = sbr.rel (0) target = $region29
    $region28: #{tpu_custom_call.1} parent=1 // pred_region
      _
    $region29: #{tpu_custom_call.1} parent=1 // pred_fallthru
      _
    // Predicated region
    $region30: #{tpu_custom_call.1} parent=1 // pred_check
      _
    $region31: #{tpu_custom_call.1} parent=1 // pred_check_branch
      %30 = sbr.rel (0) target = $region33
    $region32: #{tpu_custom_call.1} parent=1 // pred_region
      _
    $region33: #{tpu_custom_call.1} parent=1 // pred_fallthru
      _
    // Predicated region
    $region34: #{tpu_custom_call.1} parent=1 // pred_check
      _
    $region35: #{tpu_custom_call.1} parent=1 // pred_check_branch
      %32 = sbr.rel (0) target = $region37
    $region36: #{tpu_custom_call.1} parent=1 // pred_region
      _
    $region37: #{tpu_custom_call.1} parent=1 // pred_fallthru
      _
    %v34 = vlaneseq
    %v35 = vshrl.u32 %v34, 7
    %v36 = vadd.s32 %v35, 8
    %v37 = vlaneseq
    %v38 = vand.u32 %v37, 127
    %vm39 = vcmp.eq.s32.totalorder %v35, %v38
    %vm40 = vcmp.eq.s32.totalorder %v36, %v38
    %v41 = vsel %vm39, 1, 0
    %v42 = vsel %vm40, 1, 0
    %v43 = vcvt.s32.f32 %v41
    %v44 = vcvt.s32.f32 %v42
    %vm45 = vcmask 130048
    %46 = vst.msk [vmem:[#allocation2] sm:$0xff] %vm45, %v43
    %47 = vst.msk [vmem:[#allocation2 + $0x8] sm:$0xff] %vm45, %v44
    %v48 = vld [vmem:[%s1] sm:$0xff]
    %v49 = vld [vmem:[%s1 + $0x8] sm:$0xff]
    %v50 = vld [vmem:[%s1 + $0x10] sm:$0xff]
    %v51 = vld [vmem:[%s1 + $0x18] sm:$0xff]
    %v52 = vld [vmem:[%s1 + $0x20] sm:$0xff]
    %v53 = vld [vmem:[%s1 + $0x28] sm:$0xff]
    %v54 = vld [vmem:[%s1 + $0x30] sm:$0xff]
    %v55 = vld [vmem:[%s1 + $0x38] sm:$0xff]
    %v56 = vld [vmem:[%s1 + $0x40] sm:$0xff]
    %v57 = vld [vmem:[%s1 + $0x48] sm:$0xff]
    %v58 = vld [vmem:[%s1 + $0x50] sm:$0xff]
    %v59 = vld [vmem:[%s1 + $0x58] sm:$0xff]
    %v60 = vld [vmem:[%s1 + $0x60] sm:$0xff]
    %v61 = vld [vmem:[%s1 + $0x68] sm:$0xff]
    %v62 = vld [vmem:[%s1 + $0x70] sm:$0xff]
    %v63 = vld [vmem:[%s1 + $0x78] sm:$0xff]
    %v64 = vld [vmem:[%s1 + $0x80] sm:$0xff]
    %v65 = vld [vmem:[%s1 + $0x88] sm:$0xff]
    %v66 = vld [vmem:[%s1 + $0x90] sm:$0xff]
    %v67 = vld [vmem:[%s1 + $0x98] sm:$0xff]
    %v68 = vld [vmem:[%s1 + $0xa0] sm:$0xff]
    %v69 = vld [vmem:[%s1 + $0xa8] sm:$0xff]
    %v70 = vld [vmem:[%s1 + $0xb0] sm:$0xff]
    %v71 = vld [vmem:[%s1 + $0xb8] sm:$0xff]
    %v72 = vld [vmem:[%s1 + $0xc0] sm:$0xff]
    %v73 = vld [vmem:[%s1 + $0xc8] sm:$0xff]
    %v74 = vld [vmem:[%s1 + $0xd0] sm:$0xff]
    %v75 = vld [vmem:[%s1 + $0xd8] sm:$0xff]
    %v76 = vld [vmem:[%s1 + $0xe0] sm:$0xff]
    %v77 = vld [vmem:[%s1 + $0xe8] sm:$0xff]
    %v78 = vld [vmem:[%s1 + $0xf0] sm:$0xff]
    %v79 = vld [vmem:[%s1 + $0xf8] sm:$0xff]
    %v80 = vld [vmem:[%s1 + $0x100] sm:$0xff]
    %v81 = vld [vmem:[%s1 + $0x108] sm:$0xff]
    %v82 = vld [vmem:[%s1 + $0x110] sm:$0xff]
    %v83 = vld [vmem:[%s1 + $0x118] sm:$0xff]
    %v84 = vld [vmem:[%s1 + $0x120] sm:$0xff]
    %v85 = vld [vmem:[%s1 + $0x128] sm:$0xff]
    %v86 = vld [vmem:[%s1 + $0x130] sm:$0xff]
    %v87 = vld [vmem:[%s1 + $0x138] sm:$0xff]
    %v88 = vld [vmem:[%s1 + $0x140] sm:$0xff]
    %v89 = vld [vmem:[%s1 + $0x148] sm:$0xff]
    %v90 = vld [vmem:[%s1 + $0x150] sm:$0xff]
    %v91 = vld [vmem:[%s1 + $0x158] sm:$0xff]
    %v92 = vld [vmem:[%s1 + $0x160] sm:$0xff]
    %v93 = vld [vmem:[%s1 + $0x168] sm:$0xff]
    %v94 = vld [vmem:[%s1 + $0x170] sm:$0xff]
    %v95 = vld [vmem:[%s1 + $0x178] sm:$0xff]
    %v96 = vld [vmem:[%s1 + $0x180] sm:$0xff]
    %v97 = vld [vmem:[%s1 + $0x188] sm:$0xff]
    %v98 = vld [vmem:[%s1 + $0x190] sm:$0xff]
    %v99 = vld [vmem:[%s1 + $0x198] sm:$0xff]
    %v100 = vld [vmem:[%s1 + $0x1a0] sm:$0xff]
    %v101 = vld [vmem:[%s1 + $0x1a8] sm:$0xff]
    %v102 = vld [vmem:[%s1 + $0x1b0] sm:$0xff]
    %v103 = vld [vmem:[%s1 + $0x1b8] sm:$0xff]
    %v104 = vld [vmem:[%s1 + $0x1c0] sm:$0xff]
    %v105 = vld [vmem:[%s1 + $0x1c8] sm:$0xff]
    %v106 = vld [vmem:[%s1 + $0x1d0] sm:$0xff]
    %v107 = vld [vmem:[%s1 + $0x1d8] sm:$0xff]
    %v108 = vld [vmem:[%s1 + $0x1e0] sm:$0xff]
    %v109 = vld [vmem:[%s1 + $0x1e8] sm:$0xff]
    %v110 = vld [vmem:[%s1 + $0x1f0] sm:$0xff]
    %v111 = vld [vmem:[%s1 + $0x1f8] sm:$0xff]
    %v112 = vld [vmem:[%s2] sm:$0xf]
    %113 = vset.pattern.permute.xlu0 0
    %114 = vperm.xlu0 %113, %v48
    %v115 = vpop.permute.xlu0 %114
    %116 = vset.pattern.permute.xlu0 0
    %117 = vperm.xlu0 %116, %v49
    %v118 = vpop.permute.xlu0 %117
    %119 = vset.pattern.permute.xlu0 0
    %120 = vperm.xlu0 %119, %v50
    %v121 = vpop.permute.xlu0 %120
    %122 = vset.pattern.permute.xlu0 0
    %123 = vperm.xlu0 %122, %v51
    %v124 = vpop.permute.xlu0 %123
    %125 = vset.pattern.permute.xlu0 0
    %126 = vperm.xlu0 %125, %v52
    %v127 = vpop.permute.xlu0 %126
    %128 = vset.pattern.permute.xlu0 0
    %129 = vperm.xlu0 %128, %v53
    %v130 = vpop.permute.xlu0 %129
    %131 = vset.pattern.permute.xlu0 0
    %132 = vperm.xlu0 %131, %v54
    %v133 = vpop.permute.xlu0 %132
    %134 = vset.pattern.permute.xlu0 0
    %135 = vperm.xlu0 %134, %v55
    %v136 = vpop.permute.xlu0 %135
    %137 = vset.pattern.permute.xlu0 0
    %138 = vperm.xlu0 %137, %v56
    %v139 = vpop.permute.xlu0 %138
    %140 = vset.pattern.permute.xlu0 0
    %141 = vperm.xlu0 %140, %v57
    %v142 = vpop.permute.xlu0 %141
    %143 = vset.pattern.permute.xlu0 0
    %144 = vperm.xlu0 %143, %v58
    %v145 = vpop.permute.xlu0 %144
    %146 = vset.pattern.permute.xlu0 0
    %147 = vperm.xlu0 %146, %v59
    %v148 = vpop.permute.xlu0 %147
    %149 = vset.pattern.permute.xlu0 0
    %150 = vperm.xlu0 %149, %v60
    %v151 = vpop.permute.xlu0 %150
    %152 = vset.pattern.permute.xlu0 0
    %153 = vperm.xlu0 %152, %v61
    %v154 = vpop.permute.xlu0 %153
    %155 = vset.pattern.permute.xlu0 0
    %156 = vperm.xlu0 %155, %v62
    %v157 = vpop.permute.xlu0 %156
    %158 = vset.pattern.permute.xlu0 0
    %159 = vperm.xlu0 %158, %v63
    %v160 = vpop.permute.xlu0 %159
    %161 = vset.pattern.permute.xlu0 0
    %162 = vperm.xlu0 %161, %v64
    %v163 = vpop.permute.xlu0 %162
    %164 = vset.pattern.permute.xlu0 0
    %165 = vperm.xlu0 %164, %v65
    %v166 = vpop.permute.xlu0 %165
    %167 = vset.pattern.permute.xlu0 0
    %168 = vperm.xlu0 %167, %v66
    %v169 = vpop.permute.xlu0 %168
    %170 = vset.pattern.permute.xlu0 0
    %171 = vperm.xlu0 %170, %v67
    %v172 = vpop.permute.xlu0 %171
    %173 = vset.pattern.permute.xlu0 0
    %174 = vperm.xlu0 %173, %v68
    %v175 = vpop.permute.xlu0 %174
    %176 = vset.pattern.permute.xlu0 0
    %177 = vperm.xlu0 %176, %v69
    %v178 = vpop.permute.xlu0 %177
    %179 = vset.pattern.permute.xlu0 0
    %180 = vperm.xlu0 %179, %v70
    %v181 = vpop.permute.xlu0 %180
    %182 = vset.pattern.permute.xlu0 0
    %183 = vperm.xlu0 %182, %v71
    %v184 = vpop.permute.xlu0 %183
    %185 = vset.pattern.permute.xlu0 0
    %186 = vperm.xlu0 %185, %v72
    %v187 = vpop.permute.xlu0 %186
    %188 = vset.pattern.permute.xlu0 0
    %189 = vperm.xlu0 %188, %v73
    %v190 = vpop.permute.xlu0 %189
    %191 = vset.pattern.permute.xlu0 0
    %192 = vperm.xlu0 %191, %v74
    %v193 = vpop.permute.xlu0 %192
    %194 = vset.pattern.permute.xlu0 0
    %195 = vperm.xlu0 %194, %v75
    %v196 = vpop.permute.xlu0 %195
    %197 = vset.pattern.permute.xlu0 0
    %198 = vperm.xlu0 %197, %v76
    %v199 = vpop.permute.xlu0 %198
    %200 = vset.pattern.permute.xlu0 0
    %201 = vperm.xlu0 %200, %v77
    %v202 = vpop.permute.xlu0 %201
    %203 = vset.pattern.permute.xlu0 0
    %204 = vperm.xlu0 %203, %v78
    %v205 = vpop.permute.xlu0 %204
    %206 = vset.pattern.permute.xlu0 0
    %207 = vperm.xlu0 %206, %v79
    %v208 = vpop.permute.xlu0 %207
    %209 = vset.pattern.permute.xlu0 0
    %210 = vperm.xlu0 %209, %v80
    %v211 = vpop.permute.xlu0 %210
    %212 = vset.pattern.permute.xlu0 0
    %213 = vperm.xlu0 %212, %v81
    %v214 = vpop.permute.xlu0 %213
    %215 = vset.pattern.permute.xlu0 0
    %216 = vperm.xlu0 %215, %v82
    %v217 = vpop.permute.xlu0 %216
    %218 = vset.pattern.permute.xlu0 0
    %219 = vperm.xlu0 %218, %v83
    %v220 = vpop.permute.xlu0 %219
    %221 = vset.pattern.permute.xlu0 0
    %222 = vperm.xlu0 %221, %v84
    %v223 = vpop.permute.xlu0 %222
    %224 = vset.pattern.permute.xlu0 0
    %225 = vperm.xlu0 %224, %v85
    %v226 = vpop.permute.xlu0 %225
    %227 = vset.pattern.permute.xlu0 0
    %228 = vperm.xlu0 %227, %v86
    %v229 = vpop.permute.xlu0 %228
    %230 = vset.pattern.permute.xlu0 0
    %231 = vperm.xlu0 %230, %v87
    %v232 = vpop.permute.xlu0 %231
    %233 = vset.pattern.permute.xlu0 0
    %234 = vperm.xlu0 %233, %v88
    %v235 = vpop.permute.xlu0 %234
    %236 = vset.pattern.permute.xlu0 0
    %237 = vperm.xlu0 %236, %v89
    %v238 = vpop.permute.xlu0 %237
    %239 = vset.pattern.permute.xlu0 0
    %240 = vperm.xlu0 %239, %v90
    %v241 = vpop.permute.xlu0 %240
    %242 = vset.pattern.permute.xlu0 0
    %243 = vperm.xlu0 %242, %v91
    %v244 = vpop.permute.xlu0 %243
    %245 = vset.pattern.permute.xlu0 0
    %246 = vperm.xlu0 %245, %v92
    %v247 = vpop.permute.xlu0 %246
    %248 = vset.pattern.permute.xlu0 0
    %249 = vperm.xlu0 %248, %v93
    %v250 = vpop.permute.xlu0 %249
    %251 = vset.pattern.permute.xlu0 0
    %252 = vperm.xlu0 %251, %v94
    %v253 = vpop.permute.xlu0 %252
    %254 = vset.pattern.permute.xlu0 0
    %255 = vperm.xlu0 %254, %v95
    %v256 = vpop.permute.xlu0 %255
    %257 = vset.pattern.permute.xlu0 0
    %258 = vperm.xlu0 %257, %v96
    %v259 = vpop.permute.xlu0 %258
    %260 = vset.pattern.permute.xlu0 0
    %261 = vperm.xlu0 %260, %v97
    %v262 = vpop.permute.xlu0 %261
    %263 = vset.pattern.permute.xlu0 0
    %264 = vperm.xlu0 %263, %v98
    %v265 = vpop.permute.xlu0 %264
    %266 = vset.pattern.permute.xlu0 0
    %267 = vperm.xlu0 %266, %v99
    %v268 = vpop.permute.xlu0 %267
    %269 = vset.pattern.permute.xlu0 0
    %270 = vperm.xlu0 %269, %v100
    %v271 = vpop.permute.xlu0 %270
    %272 = vset.pattern.permute.xlu0 0
    %273 = vperm.xlu0 %272, %v101
    %v274 = vpop.permute.xlu0 %273
    %275 = vset.pattern.permute.xlu0 0
    %276 = vperm.xlu0 %275, %v102
    %v277 = vpop.permute.xlu0 %276
    %278 = vset.pattern.permute.xlu0 0
    %279 = vperm.xlu0 %278, %v103
    %v280 = vpop.permute.xlu0 %279
    %281 = vset.pattern.permute.xlu0 0
    %282 = vperm.xlu0 %281, %v104
    %v283 = vpop.permute.xlu0 %282
    %284 = vset.pattern.permute.xlu0 0
    %285 = vperm.xlu0 %284, %v105
    %v286 = vpop.permute.xlu0 %285
    %287 = vset.pattern.permute.xlu0 0
    %288 = vperm.xlu0 %287, %v106
    %v289 = vpop.permute.xlu0 %288
    %290 = vset.pattern.permute.xlu0 0
    %291 = vperm.xlu0 %290, %v107
    %v292 = vpop.permute.xlu0 %291
    %293 = vset.pattern.permute.xlu0 0
    %294 = vperm.xlu0 %293, %v108
    %v295 = vpop.permute.xlu0 %294
    %296 = vset.pattern.permute.xlu0 0
    %297 = vperm.xlu0 %296, %v109
    %v298 = vpop.permute.xlu0 %297
    %299 = vset.pattern.permute.xlu0 0
    %300 = vperm.xlu0 %299, %v110
    %v301 = vpop.permute.xlu0 %300
    %302 = vset.pattern.permute.xlu0 0
    %303 = vperm.xlu0 %302, %v111
    %v304 = vpop.permute.xlu0 %303
    %vm305 = vcmp.eq.s32.totalorder %v38, %v115
    %vm306 = vcmp.eq.s32.totalorder %v38, %v118
    %vm307 = vcmp.eq.s32.totalorder %v38, %v121
    %vm308 = vcmp.eq.s32.totalorder %v38, %v124
    %vm309 = vcmp.eq.s32.totalorder %v38, %v127
    %vm310 = vcmp.eq.s32.totalorder %v38, %v130
    %vm311 = vcmp.eq.s32.totalorder %v38, %v133
    %vm312 = vcmp.eq.s32.totalorder %v38, %v136
    %vm313 = vcmp.eq.s32.totalorder %v38, %v139
    %vm314 = vcmp.eq.s32.totalorder %v38, %v142
    %vm315 = vcmp.eq.s32.totalorder %v38, %v145
    %vm316 = vcmp.eq.s32.totalorder %v38, %v148
    %vm317 = vcmp.eq.s32.totalorder %v38, %v151
    %vm318 = vcmp.eq.s32.totalorder %v38, %v154
    %vm319 = vcmp.eq.s32.totalorder %v38, %v157
    %vm320 = vcmp.eq.s32.totalorder %v38, %v160
    %vm321 = vcmp.eq.s32.totalorder %v38, %v163
    %vm322 = vcmp.eq.s32.totalorder %v38, %v166
    %vm323 = vcmp.eq.s32.totalorder %v38, %v169
    %vm324 = vcmp.eq.s32.totalorder %v38, %v172
    %vm325 = vcmp.eq.s32.totalorder %v38, %v175
    %vm326 = vcmp.eq.s32.totalorder %v38, %v178
    %vm327 = vcmp.eq.s32.totalorder %v38, %v181
    %vm328 = vcmp.eq.s32.totalorder %v38, %v184
    %vm329 = vcmp.eq.s32.totalorder %v38, %v187
    %vm330 = vcmp.eq.s32.totalorder %v38, %v190
    %vm331 = vcmp.eq.s32.totalorder %v38, %v193
    %vm332 = vcmp.eq.s32.totalorder %v38, %v196
    %vm333 = vcmp.eq.s32.totalorder %v38, %v199
    %vm334 = vcmp.eq.s32.totalorder %v38, %v202
    %vm335 = vcmp.eq.s32.totalorder %v38, %v205
    %vm336 = vcmp.eq.s32.totalorder %v38, %v208
    %vm337 = vcmp.eq.s32.totalorder %v38, %v211
    %vm338 = vcmp.eq.s32.totalorder %v38, %v214
    %vm339 = vcmp.eq.s32.totalorder %v38, %v217
    %vm340 = vcmp.eq.s32.totalorder %v38, %v220
    %vm341 = vcmp.eq.s32.totalorder %v38, %v223
    %vm342 = vcmp.eq.s32.totalorder %v38, %v226
    %vm343 = vcmp.eq.s32.totalorder %v38, %v229
    %vm344 = vcmp.eq.s32.totalorder %v38, %v232
    %vm345 = vcmp.eq.s32.totalorder %v38, %v235
    %vm346 = vcmp.eq.s32.totalorder %v38, %v238
    %vm347 = vcmp.eq.s32.totalorder %v38, %v241
    %vm348 = vcmp.eq.s32.totalorder %v38, %v244
    %vm349 = vcmp.eq.s32.totalorder %v38, %v247
    %vm350 = vcmp.eq.s32.totalorder %v38, %v250
    %vm351 = vcmp.eq.s32.totalorder %v38, %v253
    %vm352 = vcmp.eq.s32.totalorder %v38, %v256
    %vm353 = vcmp.eq.s32.totalorder %v38, %v259
    %vm354 = vcmp.eq.s32.totalorder %v38, %v262
    %vm355 = vcmp.eq.s32.totalorder %v38, %v265
    %vm356 = vcmp.eq.s32.totalorder %v38, %v268
    %vm357 = vcmp.eq.s32.totalorder %v38, %v271
    %vm358 = vcmp.eq.s32.totalorder %v38, %v274
    %vm359 = vcmp.eq.s32.totalorder %v38, %v277
    %vm360 = vcmp.eq.s32.totalorder %v38, %v280
    %vm361 = vcmp.eq.s32.totalorder %v38, %v283
    %vm362 = vcmp.eq.s32.totalorder %v38, %v286
    %vm363 = vcmp.eq.s32.totalorder %v38, %v289
    %vm364 = vcmp.eq.s32.totalorder %v38, %v292
    %vm365 = vcmp.eq.s32.totalorder %v38, %v295
    %vm366 = vcmp.eq.s32.totalorder %v38, %v298
    %vm367 = vcmp.eq.s32.totalorder %v38, %v301
    %vm368 = vcmp.eq.s32.totalorder %v38, %v304
    %v369 = vsel %vm305, 1, 0
    %v370 = vsel %vm306, 1, 0
    %v371 = vsel %vm307, 1, 0
    %v372 = vsel %vm308, 1, 0
    %v373 = vsel %vm309, 1, 0
    %v374 = vsel %vm310, 1, 0
    %v375 = vsel %vm311, 1, 0
    %v376 = vsel %vm312, 1, 0
    %v377 = vsel %vm313, 1, 0
    %v378 = vsel %vm314, 1, 0
    %v379 = vsel %vm315, 1, 0
    %v380 = vsel %vm316, 1, 0
    %v381 = vsel %vm317, 1, 0
    %v382 = vsel %vm318, 1, 0
    %v383 = vsel %vm319, 1, 0
    %v384 = vsel %vm320, 1, 0
    %v385 = vsel %vm321, 1, 0
    %v386 = vsel %vm322, 1, 0
    %v387 = vsel %vm323, 1, 0
    %v388 = vsel %vm324, 1, 0
    %v389 = vsel %vm325, 1, 0
    %v390 = vsel %vm326, 1, 0
    %v391 = vsel %vm327, 1, 0
    %v392 = vsel %vm328, 1, 0
    %v393 = vsel %vm329, 1, 0
    %v394 = vsel %vm330, 1, 0
    %v395 = vsel %vm331, 1, 0
    %v396 = vsel %vm332, 1, 0
    %v397 = vsel %vm333, 1, 0
    %v398 = vsel %vm334, 1, 0
    %v399 = vsel %vm335, 1, 0
    %v400 = vsel %vm336, 1, 0
    %v401 = vsel %vm337, 1, 0
    %v402 = vsel %vm338, 1, 0
    %v403 = vsel %vm339, 1, 0
    %v404 = vsel %vm340, 1, 0
    %v405 = vsel %vm341, 1, 0
    %v406 = vsel %vm342, 1, 0
    %v407 = vsel %vm343, 1, 0
    %v408 = vsel %vm344, 1, 0
    %v409 = vsel %vm345, 1, 0
    %v410 = vsel %vm346, 1, 0
    %v411 = vsel %vm347, 1, 0
    %v412 = vsel %vm348, 1, 0
    %v413 = vsel %vm349, 1, 0
    %v414 = vsel %vm350, 1, 0
    %v415 = vsel %vm351, 1, 0
    %v416 = vsel %vm352, 1, 0
    %v417 = vsel %vm353, 1, 0
    %v418 = vsel %vm354, 1, 0
    %v419 = vsel %vm355, 1, 0
    %v420 = vsel %vm356, 1, 0
    %v421 = vsel %vm357, 1, 0
    %v422 = vsel %vm358, 1, 0
    %v423 = vsel %vm359, 1, 0
    %v424 = vsel %vm360, 1, 0
    %v425 = vsel %vm361, 1, 0
    %v426 = vsel %vm362, 1, 0
    %v427 = vsel %vm363, 1, 0
    %v428 = vsel %vm364, 1, 0
    %v429 = vsel %vm365, 1, 0
    %v430 = vsel %vm366, 1, 0
    %v431 = vsel %vm367, 1, 0
    %v432 = vsel %vm368, 1, 0
    %v433 = vcvt.s32.f32 %v369
    %v434 = vcvt.s32.f32 %v370
    %v435 = vcvt.s32.f32 %v371
    %v436 = vcvt.s32.f32 %v372
    %v437 = vcvt.s32.f32 %v373
    %v438 = vcvt.s32.f32 %v374
    %v439 = vcvt.s32.f32 %v375
    %v440 = vcvt.s32.f32 %v376
    %v441 = vcvt.s32.f32 %v377
    %v442 = vcvt.s32.f32 %v378
    %v443 = vcvt.s32.f32 %v379
    %v444 = vcvt.s32.f32 %v380
    %v445 = vcvt.s32.f32 %v381
    %v446 = vcvt.s32.f32 %v382
    %v447 = vcvt.s32.f32 %v383
    %v448 = vcvt.s32.f32 %v384
    %v449 = vcvt.s32.f32 %v385
    %v450 = vcvt.s32.f32 %v386
    %v451 = vcvt.s32.f32 %v387
    %v452 = vcvt.s32.f32 %v388
    %v453 = vcvt.s32.f32 %v389
    %v454 = vcvt.s32.f32 %v390
    %v455 = vcvt.s32.f32 %v391
    %v456 = vcvt.s32.f32 %v392
    %v457 = vcvt.s32.f32 %v393
    %v458 = vcvt.s32.f32 %v394
    %v459 = vcvt.s32.f32 %v395
    %v460 = vcvt.s32.f32 %v396
    %v461 = vcvt.s32.f32 %v397
    %v462 = vcvt.s32.f32 %v398
    %v463 = vcvt.s32.f32 %v399
    %v464 = vcvt.s32.f32 %v400
    %v465 = vcvt.s32.f32 %v401
    %v466 = vcvt.s32.f32 %v402
    %v467 = vcvt.s32.f32 %v403
    %v468 = vcvt.s32.f32 %v404
    %v469 = vcvt.s32.f32 %v405
    %v470 = vcvt.s32.f32 %v406
    %v471 = vcvt.s32.f32 %v407
    %v472 = vcvt.s32.f32 %v408
    %v473 = vcvt.s32.f32 %v409
    %v474 = vcvt.s32.f32 %v410
    %v475 = vcvt.s32.f32 %v411
    %v476 = vcvt.s32.f32 %v412
    %v477 = vcvt.s32.f32 %v413
    %v478 = vcvt.s32.f32 %v414
    %v479 = vcvt.s32.f32 %v415
    %v480 = vcvt.s32.f32 %v416
    %v481 = vcvt.s32.f32 %v417
    %v482 = vcvt.s32.f32 %v418
    %v483 = vcvt.s32.f32 %v419
    %v484 = vcvt.s32.f32 %v420
    %v485 = vcvt.s32.f32 %v421
    %v486 = vcvt.s32.f32 %v422
    %v487 = vcvt.s32.f32 %v423
    %v488 = vcvt.s32.f32 %v424
    %v489 = vcvt.s32.f32 %v425
    %v490 = vcvt.s32.f32 %v426
    %v491 = vcvt.s32.f32 %v427
    %v492 = vcvt.s32.f32 %v428
    %v493 = vcvt.s32.f32 %v429
    %v494 = vcvt.s32.f32 %v430
    %v495 = vcvt.s32.f32 %v431
    %v496 = vcvt.s32.f32 %v432
    %v497 = vpack.c.bf16 %v434, %v433
    %v498 = vpack.c.bf16 %v436, %v435
    %v499 = vpack.c.bf16 %v438, %v437
    %v500 = vpack.c.bf16 %v440, %v439
    %v501 = vpack.c.bf16 %v442, %v441
    %v502 = vpack.c.bf16 %v444, %v443
    %v503 = vpack.c.bf16 %v446, %v445
    %v504 = vpack.c.bf16 %v448, %v447
    %v505 = vpack.c.bf16 %v450, %v449
    %v506 = vpack.c.bf16 %v452, %v451
    %v507 = vpack.c.bf16 %v454, %v453
    %v508 = vpack.c.bf16 %v456, %v455
    %v509 = vpack.c.bf16 %v458, %v457
    %v510 = vpack.c.bf16 %v460, %v459
    %v511 = vpack.c.bf16 %v462, %v461
    %v512 = vpack.c.bf16 %v464, %v463
    %v513 = vpack.c.bf16 %v466, %v465
    %v514 = vpack.c.bf16 %v468, %v467
    %v515 = vpack.c.bf16 %v470, %v469
    %v516 = vpack.c.bf16 %v472, %v471
    %v517 = vpack.c.bf16 %v474, %v473
    %v518 = vpack.c.bf16 %v476, %v475
    %v519 = vpack.c.bf16 %v478, %v477
    %v520 = vpack.c.bf16 %v480, %v479
    %v521 = vpack.c.bf16 %v482, %v481
    %v522 = vpack.c.bf16 %v484, %v483
    %v523 = vpack.c.bf16 %v486, %v485
    %v524 = vpack.c.bf16 %v488, %v487
    %v525 = vpack.c.bf16 %v490, %v489
    %v526 = vpack.c.bf16 %v492, %v491
    %v527 = vpack.c.bf16 %v494, %v493
    %v528 = vpack.c.bf16 %v496, %v495
    %v529 = vlaneseq
    %v530 = vshrl.u32 %v529, 7
    %v531 = vsub.s32 0, %v530
    %v532 = vrot.slane %v112, %v531
    %v533 = vlaneseq
    %v534 = vshrl.u32 %v533, 7
    %v535 = vsub.s32 1, %v534
    %v536 = vrot.slane %v112, %v535
    %v537 = vlaneseq
    %v538 = vshrl.u32 %v537, 7
    %v539 = vsub.s32 2, %v538
    %v540 = vrot.slane %v112, %v539
    %v541 = vlaneseq
    %v542 = vshrl.u32 %v541, 7
    %v543 = vsub.s32 3, %v542
    %v544 = vrot.slane %v112, %v543
    %vm545 = vcmp.eq.s32.totalorder %v35, %v532
    %vm546 = vcmp.eq.s32.totalorder %v35, %v536
    %vm547 = vcmp.eq.s32.totalorder %v35, %v540
    %vm548 = vcmp.eq.s32.totalorder %v35, %v544
    %vm549 = vcmp.eq.s32.totalorder %v36, %v532
    %vm550 = vcmp.eq.s32.totalorder %v36, %v536
    %vm551 = vcmp.eq.s32.totalorder %v36, %v540
    %vm552 = vcmp.eq.s32.totalorder %v36, %v544
    %v553 = vsel %vm545, 1, 0
    %v554 = vsel %vm546, 1, 0
    %v555 = vsel %vm547, 1, 0
    %v556 = vsel %vm548, 1, 0
    %v557 = vsel %vm549, 1, 0
    %v558 = vsel %vm550, 1, 0
    %v559 = vsel %vm551, 1, 0
    %v560 = vsel %vm552, 1, 0
    %v561 = vcvt.s32.f32 %v553
    %v562 = vcvt.s32.f32 %v554
    %v563 = vcvt.s32.f32 %v555
    %v564 = vcvt.s32.f32 %v556
    %v565 = vcvt.s32.f32 %v557
    %v566 = vcvt.s32.f32 %v558
    %v567 = vcvt.s32.f32 %v559
    %v568 = vcvt.s32.f32 %v560
    %v569 = vpack.c.bf16 %v565, %v561
    %v570 = vpack.c.bf16 %v566, %v562
    %v571 = vpack.c.bf16 %v567, %v563
    %v572 = vpack.c.bf16 %v568, %v564
    %v573 = vld [vmem:[#allocation2] sm:$0xff]
    %v574 = vld [vmem:[#allocation2 + $0x8] sm:$0xff]
    %575 = vmatprep.subr.bf16.mxu0 0
    %576 = vmatpush1.bf16.msra.mxu0 %v497
    %577 = vmatprep.subr.bf16.mxu0 0
    %578 = vmatpush1.bf16.msra.mxu0 %v498
    %579 = vmatprep.subr.bf16.mxu0 0
    %580 = vmatpush1.bf16.msra.mxu0 %v499
    %581 = vmatprep.subr.bf16.mxu0 0
    %582 = vmatpush1.bf16.msra.mxu0 %v500
    %583 = vmatprep.subr.bf16.mxu0 0
    %584 = vmatpush1.bf16.msra.mxu0 %v501
    %585 = vmatprep.subr.bf16.mxu0 0
    %586 = vmatpush1.bf16.msra.mxu0 %v502
    %587 = vmatprep.subr.bf16.mxu0 0
    %588 = vmatpush1.bf16.msra.mxu0 %v503
    %589 = vmatprep.subr.bf16.mxu0 0
    %590 = vmatpush1.bf16.msra.mxu0 %v504
    %591 = vmatprep.subr.bf16.mxu0 0
    %592 = vmatpush1.bf16.msra.mxu0 %v505
    %593 = vmatprep.subr.bf16.mxu0 0
    %594 = vmatpush1.bf16.msra.mxu0 %v506
    %595 = vmatprep.subr.bf16.mxu0 0
    %596 = vmatpush1.bf16.msra.mxu0 %v507
    %597 = vmatprep.subr.bf16.mxu0 0
    %598 = vmatpush1.bf16.msra.mxu0 %v508
    %599 = vmatprep.subr.bf16.mxu0 0
    %600 = vmatpush1.bf16.msra.mxu0 %v509
    %601 = vmatprep.subr.bf16.mxu0 0
    %602 = vmatpush1.bf16.msra.mxu0 %v510
    %603 = vmatprep.subr.bf16.mxu0 0
    %604 = vmatpush1.bf16.msra.mxu0 %v511
    %605 = vmatprep.subr.bf16.mxu0 0
    %606 = vmatpush1.bf16.msra.mxu0 %v512
    %607 = vmatprep.mubr.bf16.mxu0 %v570
    %608 = vmatmul.mubr.bf16.gmra.mrb[0].mxu0 %v569
    %v609 = vpop.f32.mrb[0].mxu0
    %v610 = vadd.f32 0.0, %v609
    %v611 = vpop.f32.mrb[0].mxu0
    %v612 = vpop.f32.mrb[0].mxu0
    %v613 = vadd.f32 0.0, %v612
    %v614 = vpop.f32.mrb[0].mxu0
    %615 = vdwg.mxu0
    %616 = vmatprep.subr.bf16.mxu0 0
    %617 = vmatpush1.bf16.msra.mxu0 %v513
    %618 = vmatprep.subr.bf16.mxu0 0
    %619 = vmatpush1.bf16.msra.mxu0 %v514
    %620 = vmatprep.subr.bf16.mxu0 0
    %621 = vmatpush1.bf16.msra.mxu0 %v515
    %622 = vmatprep.subr.bf16.mxu0 0
    %623 = vmatpush1.bf16.msra.mxu0 %v516
    %624 = vmatprep.subr.bf16.mxu0 0
    %625 = vmatpush1.bf16.msra.mxu0 %v517
    %626 = vmatprep.subr.bf16.mxu0 0
    %627 = vmatpush1.bf16.msra.mxu0 %v518
    %628 = vmatprep.subr.bf16.mxu0 0
    %629 = vmatpush1.bf16.msra.mxu0 %v519
    %630 = vmatprep.subr.bf16.mxu0 0
    %631 = vmatpush1.bf16.msra.mxu0 %v520
    %632 = vmatprep.subr.bf16.mxu0 0
    %633 = vmatpush1.bf16.msra.mxu0 %v521
    %634 = vmatprep.subr.bf16.mxu0 0
    %635 = vmatpush1.bf16.msra.mxu0 %v522
    %636 = vmatprep.subr.bf16.mxu0 0
    %637 = vmatpush1.bf16.msra.mxu0 %v523
    %638 = vmatprep.subr.bf16.mxu0 0
    %639 = vmatpush1.bf16.msra.mxu0 %v524
    %640 = vmatprep.subr.bf16.mxu0 0
    %641 = vmatpush1.bf16.msra.mxu0 %v525
    %642 = vmatprep.subr.bf16.mxu0 0
    %643 = vmatpush1.bf16.msra.mxu0 %v526
    %644 = vmatprep.subr.bf16.mxu0 0
    %645 = vmatpush1.bf16.msra.mxu0 %v527
    %646 = vmatprep.subr.bf16.mxu0 0
    %647 = vmatpush1.bf16.msra.mxu0 %v528
    %648 = vmatprep.mubr.bf16.mxu0 %v572
    %649 = vmatmul.mubr.bf16.gmra.mrb[0].mxu0 %v571
    %v650 = vpop.f32.mrb[0].mxu0
    %v651 = vadd.f32 %v610, %v650
    %v652 = vpop.f32.mrb[0].mxu0
    %v653 = vpop.f32.mrb[0].mxu0
    %v654 = vadd.f32 %v613, %v653
    %v655 = vpop.f32.mrb[0].mxu0
    %656 = vdwg.mxu0
    %v657 = vadd.f32 %v573, %v651
    %v658 = vadd.f32 %v574, %v654
    %659 = vst.msk [vmem:[#allocation2] sm:$0xff] %vm45, %v657
    %660 = vst.msk [vmem:[#allocation2 + $0x8] sm:$0xff] %vm45, %v658
    %v661 = vld [vmem:[#allocation2] sm:$0xff]
    %v662 = vld [vmem:[#allocation2 + $0x8] sm:$0xff]
    %v663 = vld [vmem:[%s6] sm:$0xff]
    %v664 = vld [vmem:[%s6 + $0x8] sm:$0xff]
    %v665 = vld [vmem:[%s6 + $0x10] sm:$0x3]
    %v666 = vld [vmem:[%s0] sm:$0xff]
    %v667 = vld [vmem:[%s0 + $0x8] sm:$0xff]
    %v668 = vld [vmem:[%s4] sm:$0xff]
    %s669 = scalar_lea.vmem %s5, 64
    %v670 = vld [vmem:[%s669] sm:$0xff]
    %v671 = vld [vmem:[%s669 + $0x8] sm:$0xff]
    %v672 = vld [vmem:[%s669 + $0x10] sm:$0xff]
    %v673 = vld [vmem:[%s669 + $0x18] sm:$0xff]
    %v675 = vsel %vm45, %v661, 0
    %v678 = vsel %vm45, %v662, 0
    %680 = vmatprep.subr.mxu0 0.0
    %681 = vmatpush1.msra.mxu0 %v666
    %682 = vmatprep.subr.mxu0 0.0
    %683 = vmatpush1.msra.mxu0 %v667
    %684 = vmatprep.subr.mxu0 0.0
    %685 = vmatpush1.msra.mxu0 0.0
    %686 = vmatprep.subr.mxu0 0.0
    %687 = vmatpush1.msra.mxu0 0.0
    %688 = vmatprep.subr.mxu0 0.0
    %689 = vmatpush1.msra.mxu0 0.0
    %690 = vmatprep.subr.mxu0 0.0
    %691 = vmatpush1.msra.mxu0 0.0
    %692 = vmatprep.subr.mxu0 0.0
    %693 = vmatpush1.msra.mxu0 0.0
    %694 = vmatprep.subr.mxu0 0.0
    %695 = vmatpush1.msra.mxu0 0.0
    %696 = vmatprep.subr.mxu0 0.0
    %697 = vmatpush1.msra.mxu0 0.0
    %698 = vmatprep.subr.mxu0 0.0
    %699 = vmatpush1.msra.mxu0 0.0
    %700 = vmatprep.subr.mxu0 0.0
    %701 = vmatpush1.msra.mxu0 0.0
    %702 = vmatprep.subr.mxu0 0.0
    %703 = vmatpush1.msra.mxu0 0.0
    %704 = vmatprep.subr.mxu0 0.0
    %705 = vmatpush1.msra.mxu0 0.0
    %706 = vmatprep.subr.mxu0 0.0
    %707 = vmatpush1.msra.mxu0 0.0
    %708 = vmatprep.subr.mxu0 0.0
    %709 = vmatpush1.msra.mxu0 0.0
    %710 = vmatprep.subr.mxu0 0.0
    %711 = vmatpush1.msra.mxu0 0.0
    %712 = vmatprep.subr.mxu0 0.0
    %713 = vmatpush1.msra.mxu0 0.0
    %714 = vmatprep.subr.mxu0 0.0
    %715 = vmatpush1.msra.mxu0 0.0
    %716 = vmatprep.subr.mxu0 0.0
    %717 = vmatpush1.msra.mxu0 0.0
    %718 = vmatprep.subr.mxu0 0.0
    %719 = vmatpush1.msra.mxu0 0.0
    %720 = vmatprep.subr.mxu0 0.0
    %721 = vmatpush1.msra.mxu0 0.0
    %722 = vmatprep.subr.mxu0 0.0
    %723 = vmatpush1.msra.mxu0 0.0
    %724 = vmatprep.subr.mxu0 0.0
    %725 = vmatpush1.msra.mxu0 0.0
    %726 = vmatprep.subr.mxu0 0.0
    %727 = vmatpush1.msra.mxu0 0.0
    %728 = vmatprep.subr.mxu0 0.0
    %729 = vmatpush1.msra.mxu0 0.0
    %730 = vmatprep.subr.mxu0 0.0
    %731 = vmatpush1.msra.mxu0 0.0
    %732 = vmatprep.subr.mxu0 0.0
    %733 = vmatpush1.msra.mxu0 0.0
    %734 = vmatprep.subr.mxu0 0.0
    %735 = vmatpush1.msra.mxu0 0.0
    %736 = vmatprep.subr.mxu0 0.0
    %737 = vmatpush1.msra.mxu0 0.0
    %738 = vmatprep.subr.mxu0 0.0
    %739 = vmatpush1.msra.mxu0 0.0
    %740 = vmatprep.subr.mxu0 0.0
    %741 = vmatpush1.msra.mxu0 0.0
    %742 = vmatprep.subr.mxu0 0.0
    %743 = vmatpush1.msra.mxu0 0.0
    %744 = vmatprep.mubr.f32.mxu0 0.0
    %745 = vmatmul.mubr.f32.gmra.mrb[0].mxu0 %v675
    %v746 = vpop.f32.mrb[0].mxu0
    %v747 = vadd.f32 0.0, %v746
    %v748 = vpop.f32.mrb[0].mxu0
    %749 = vmatprep.mubr.f32.mxu0 0.0
    %750 = vmatmul.mubr.f32.gmra.mrb[0].mxu0 %v678
    %v751 = vpop.f32.mrb[0].mxu0
    %v752 = vadd.f32 0.0, %v751
    %v753 = vpop.f32.mrb[0].mxu0
    %754 = vdwg.mxu0
    %v755 = vlaneseq
    %v756 = vshrl.u32 %v755, 7
    %v757 = vsub.s32 0, %v756
    %v758 = vrot.slane %v663, %v757
    %vm759 = vcmask 64512
    %v761 = vsel %vm759, %v747, 0
    %v764 = vsel %vm759, %v752, 0
    %766 = vmatprep.subr.mxu0 0.0
    %767 = vmatpush1.msra.mxu0 %v668
    %768 = vmatprep.subr.mxu0 0.0
    %769 = vmatpush1.msra.mxu0 0.0
    %770 = vmatprep.subr.mxu0 0.0
    %771 = vmatpush1.msra.mxu0 0.0
    %772 = vmatprep.subr.mxu0 0.0
    %773 = vmatpush1.msra.mxu0 0.0
    %774 = vmatprep.subr.mxu0 0.0
    %775 = vmatpush1.msra.mxu0 0.0
    %776 = vmatprep.subr.mxu0 0.0
    %777 = vmatpush1.msra.mxu0 0.0
    %778 = vmatprep.subr.mxu0 0.0
    %779 = vmatpush1.msra.mxu0 0.0
    %780 = vmatprep.subr.mxu0 0.0
    %781 = vmatpush1.msra.mxu0 0.0
    %782 = vmatprep.subr.mxu0 0.0
    %783 = vmatpush1.msra.mxu0 0.0
    %784 = vmatprep.subr.mxu0 0.0
    %785 = vmatpush1.msra.mxu0 0.0
    %786 = vmatprep.subr.mxu0 0.0
    %787 = vmatpush1.msra.mxu0 0.0
    %788 = vmatprep.subr.mxu0 0.0
    %789 = vmatpush1.msra.mxu0 0.0
    %790 = vmatprep.subr.mxu0 0.0
    %791 = vmatpush1.msra.mxu0 0.0
    %792 = vmatprep.subr.mxu0 0.0
    %793 = vmatpush1.msra.mxu0 0.0
    %794 = vmatprep.subr.mxu0 0.0
    %795 = vmatpush1.msra.mxu0 0.0
    %796 = vmatprep.subr.mxu0 0.0
    %797 = vmatpush1.msra.mxu0 0.0
    %798 = vmatprep.subr.mxu0 0.0
    %799 = vmatpush1.msra.mxu0 0.0
    %800 = vmatprep.subr.mxu0 0.0
    %801 = vmatpush1.msra.mxu0 0.0
    %802 = vmatprep.subr.mxu0 0.0
    %803 = vmatpush1.msra.mxu0 0.0
    %804 = vmatprep.subr.mxu0 0.0
    %805 = vmatpush1.msra.mxu0 0.0
    %806 = vmatprep.subr.mxu0 0.0
    %807 = vmatpush1.msra.mxu0 0.0
    %808 = vmatprep.subr.mxu0 0.0
    %809 = vmatpush1.msra.mxu0 0.0
    %810 = vmatprep.subr.mxu0 0.0
    %811 = vmatpush1.msra.mxu0 0.0
    %812 = vmatprep.subr.mxu0 0.0
    %813 = vmatpush1.msra.mxu0 0.0
    %814 = vmatprep.subr.mxu0 0.0
    %815 = vmatpush1.msra.mxu0 0.0
    %816 = vmatprep.subr.mxu0 0.0
    %817 = vmatpush1.msra.mxu0 0.0
    %818 = vmatprep.subr.mxu0 0.0
    %819 = vmatpush1.msra.mxu0 0.0
    %820 = vmatprep.subr.mxu0 0.0
    %821 = vmatpush1.msra.mxu0 0.0
    %822 = vmatprep.subr.mxu0 0.0
    %823 = vmatpush1.msra.mxu0 0.0
    %824 = vmatprep.subr.mxu0 0.0
    %825 = vmatpush1.msra.mxu0 0.0
    %826 = vmatprep.subr.mxu0 0.0
    %827 = vmatpush1.msra.mxu0 0.0
    %828 = vmatprep.subr.mxu0 0.0
    %829 = vmatpush1.msra.mxu0 0.0
    %830 = vmatprep.mubr.f32.mxu0 0.0
    %831 = vmatmul.mubr.f32.gmra.mrb[0].mxu0 %v761
    %v832 = vpop.f32.mrb[0].mxu0
    %v833 = vadd.f32 %v758, %v832
    %v834 = vpop.f32.mrb[0].mxu0
    %835 = vmatprep.mubr.f32.mxu0 0.0
    %836 = vmatmul.mubr.f32.gmra.mrb[0].mxu0 %v764
    %v837 = vpop.f32.mrb[0].mxu0
    %v838 = vadd.f32 %v758, %v837
    %v839 = vpop.f32.mrb[0].mxu0
    %840 = vdwg.mxu0
    %v841 = vmax.f32 %v833, 0.0
    %v842 = vmax.f32 %v838, 0.0
    %v843 = vlaneseq
    %v844 = vshrl.u32 %v843, 7
    %v845 = vsub.s32 1, %v844
    %v846 = vrot.slane %v663, %v845
    %v847 = vmul.f32 %v841, %v846
    %v848 = vmul.f32 %v842, %v846
    %v849 = vlaneseq
    %v850 = vshrl.u32 %v849, 7
    %v851 = vsub.s32 2, %v850
    %v852 = vrot.slane %v663, %v851
    %v853 = vadd.f32 %v847, %v852
    %v854 = vadd.f32 %v848, %v852
    %v855 = vlaneseq
    %v856 = vshrl.u32 %v855, 7
    %v857 = vsub.s32 3, %v856
    %v858 = vrot.slane %v663, %v857
    %vm859 = vcmask 261120
    %v861 = vsel %vm859, %v853, 0
    %v864 = vsel %vm859, %v854, 0
    %866 = vmatprep.subr.mxu0 0.0
    %867 = vmatpush1.msra.mxu0 %v670
    %868 = vmatprep.subr.mxu0 0.0
    %869 = vmatpush1.msra.mxu0 %v671
    %870 = vmatprep.subr.mxu0 0.0
    %871 = vmatpush1.msra.mxu0 %v672
    %872 = vmatprep.subr.mxu0 0.0
    %873 = vmatpush1.msra.mxu0 %v673
    %874 = vmatprep.subr.mxu0 0.0
    %875 = vmatpush1.msra.mxu0 0.0
    %876 = vmatprep.subr.mxu0 0.0
    %877 = vmatpush1.msra.mxu0 0.0
    %878 = vmatprep.subr.mxu0 0.0
    %879 = vmatpush1.msra.mxu0 0.0
    %880 = vmatprep.subr.mxu0 0.0
    %881 = vmatpush1.msra.mxu0 0.0
    %882 = vmatprep.subr.mxu0 0.0
    %883 = vmatpush1.msra.mxu0 0.0
    %884 = vmatprep.subr.mxu0 0.0
    %885 = vmatpush1.msra.mxu0 0.0
    %886 = vmatprep.subr.mxu0 0.0
    %887 = vmatpush1.msra.mxu0 0.0
    %888 = vmatprep.subr.mxu0 0.0
    %889 = vmatpush1.msra.mxu0 0.0
    %890 = vmatprep.subr.mxu0 0.0
    %891 = vmatpush1.msra.mxu0 0.0
    %892 = vmatprep.subr.mxu0 0.0
    %893 = vmatpush1.msra.mxu0 0.0
    %894 = vmatprep.subr.mxu0 0.0
    %895 = vmatpush1.msra.mxu0 0.0
    %896 = vmatprep.subr.mxu0 0.0
    %897 = vmatpush1.msra.mxu0 0.0
    %898 = vmatprep.subr.mxu0 0.0
    %899 = vmatpush1.msra.mxu0 0.0
    %900 = vmatprep.subr.mxu0 0.0
    %901 = vmatpush1.msra.mxu0 0.0
    %902 = vmatprep.subr.mxu0 0.0
    %903 = vmatpush1.msra.mxu0 0.0
    %904 = vmatprep.subr.mxu0 0.0
    %905 = vmatpush1.msra.mxu0 0.0
    %906 = vmatprep.subr.mxu0 0.0
    %907 = vmatpush1.msra.mxu0 0.0
    %908 = vmatprep.subr.mxu0 0.0
    %909 = vmatpush1.msra.mxu0 0.0
    %910 = vmatprep.subr.mxu0 0.0
    %911 = vmatpush1.msra.mxu0 0.0
    %912 = vmatprep.subr.mxu0 0.0
    %913 = vmatpush1.msra.mxu0 0.0
    %914 = vmatprep.subr.mxu0 0.0
    %915 = vmatpush1.msra.mxu0 0.0
    %916 = vmatprep.subr.mxu0 0.0
    %917 = vmatpush1.msra.mxu0 0.0
    %918 = vmatprep.subr.mxu0 0.0
    %919 = vmatpush1.msra.mxu0 0.0
    %920 = vmatprep.subr.mxu0 0.0
    %921 = vmatpush1.msra.mxu0 0.0
    %922 = vmatprep.subr.mxu0 0.0
    %923 = vmatpush1.msra.mxu0 0.0
    %924 = vmatprep.subr.mxu0 0.0
    %925 = vmatpush1.msra.mxu0 0.0
    %926 = vmatprep.subr.mxu0 0.0
    %927 = vmatpush1.msra.mxu0 0.0
    %928 = vmatprep.subr.mxu0 0.0
    %929 = vmatpush1.msra.mxu0 0.0
    %930 = vmatprep.mubr.f32.mxu0 0.0
    %931 = vmatmul.mubr.f32.gmra.mrb[0].mxu0 %v861
    %v932 = vpop.f32.mrb[0].mxu0
    %v933 = vadd.f32 %v858, %v932
    %v934 = vpop.f32.mrb[0].mxu0
    %935 = vmatprep.mubr.f32.mxu0 0.0
    %936 = vmatmul.mubr.f32.gmra.mrb[0].mxu0 %v864
    %v937 = vpop.f32.mrb[0].mxu0
    %v938 = vadd.f32 %v858, %v937
    %v939 = vpop.f32.mrb[0].mxu0
    %940 = vdwg.mxu0
    %v941 = vmax.f32 %v933, 0.0
    %v942 = vmax.f32 %v938, 0.0
    %v943 = vlaneseq
    %v944 = vshrl.u32 %v943, 7
    %v945 = vsub.s32 4, %v944
    %v946 = vrot.slane %v663, %v945
    %v947 = vmul.f32 %v941, %v946
    %v948 = vmul.f32 %v942, %v946
    %v949 = vlaneseq
    %v950 = vshrl.u32 %v949, 7
    %v951 = vsub.s32 5, %v950
    %v952 = vrot.slane %v663, %v951
    %v953 = vadd.f32 %v947, %v952
    %v954 = vadd.f32 %v948, %v952
    %v955 = vld [vmem:[%s5] sm:$0xff]
    %v956 = vld [vmem:[%s5 + $0x8] sm:$0xff]
    %v957 = vld [vmem:[%s5 + $0x10] sm:$0xff]
    %v958 = vld [vmem:[%s5 + $0x18] sm:$0xff]
    %s959 = scalar_lea.vmem %s5, 96
    %v960 = vld [vmem:[%s959] sm:$0xff]
    %v961 = vld [vmem:[%s959 + $0x8] sm:$0xff]
    %v962 = vld [vmem:[%s959 + $0x10] sm:$0xff]
    %v963 = vld [vmem:[%s959 + $0x18] sm:$0xff]
    %964 = vmatprep.subr.mxu0 0.0
    %965 = vmatpush1.msra.mxu0 %v953
    %966 = vmatprep.subr.mxu0 0.0
    %967 = vmatpush1.msra.mxu0 %v954
    %968 = vmatprep.subr.mxu0 0.0
    %969 = vmatpush1.msra.mxu0 0.0
    %970 = vmatprep.subr.mxu0 0.0
    %971 = vmatpush1.msra.mxu0 0.0
    %972 = vmatprep.subr.mxu0 0.0
    %973 = vmatpush1.msra.mxu0 0.0
    %974 = vmatprep.subr.mxu0 0.0
    %975 = vmatpush1.msra.mxu0 0.0
    %976 = vmatprep.subr.mxu0 0.0
    %977 = vmatpush1.msra.mxu0 0.0
    %978 = vmatprep.subr.mxu0 0.0
    %979 = vmatpush1.msra.mxu0 0.0
    %980 = vmatprep.subr.mxu0 0.0
    %981 = vmatpush1.msra.mxu0 0.0
    %982 = vmatprep.subr.mxu0 0.0
    %983 = vmatpush1.msra.mxu0 0.0
    %984 = vmatprep.subr.mxu0 0.0
    %985 = vmatpush1.msra.mxu0 0.0
    %986 = vmatprep.subr.mxu0 0.0
    %987 = vmatpush1.msra.mxu0 0.0
    %988 = vmatprep.subr.mxu0 0.0
    %989 = vmatpush1.msra.mxu0 0.0
    %990 = vmatprep.subr.mxu0 0.0
    %991 = vmatpush1.msra.mxu0 0.0
    %992 = vmatprep.subr.mxu0 0.0
    %993 = vmatpush1.msra.mxu0 0.0
    %994 = vmatprep.subr.mxu0 0.0
    %995 = vmatpush1.msra.mxu0 0.0
    %996 = vmatprep.subr.mxu0 0.0
    %997 = vmatpush1.msra.mxu0 0.0
    %998 = vmatprep.subr.mxu0 0.0
    %999 = vmatpush1.msra.mxu0 0.0
    %1000 = vmatprep.subr.mxu0 0.0
    %1001 = vmatpush1.msra.mxu0 0.0
    %1002 = vmatprep.subr.mxu0 0.0
    %1003 = vmatpush1.msra.mxu0 0.0
    %1004 = vmatprep.subr.mxu0 0.0
    %1005 = vmatpush1.msra.mxu0 0.0
    %1006 = vmatprep.subr.mxu0 0.0
    %1007 = vmatpush1.msra.mxu0 0.0
    %1008 = vmatprep.subr.mxu0 0.0
    %1009 = vmatpush1.msra.mxu0 0.0
    %1010 = vmatprep.subr.mxu0 0.0
    %1011 = vmatpush1.msra.mxu0 0.0
    %1012 = vmatprep.subr.mxu0 0.0
    %1013 = vmatpush1.msra.mxu0 0.0
    %1014 = vmatprep.subr.mxu0 0.0
    %1015 = vmatpush1.msra.mxu0 0.0
    %1016 = vmatprep.subr.mxu0 0.0
    %1017 = vmatpush1.msra.mxu0 0.0
    %1018 = vmatprep.subr.mxu0 0.0
    %1019 = vmatpush1.msra.mxu0 0.0
    %1020 = vmatprep.subr.mxu0 0.0
    %1021 = vmatpush1.msra.mxu0 0.0
    %1022 = vmatprep.subr.mxu0 0.0
    %1023 = vmatpush1.msra.mxu0 0.0
    %1024 = vmatprep.subr.mxu0 0.0
    %1025 = vmatpush1.msra.mxu0 0.0
    %1026 = vmatprep.subr.mxu0 0.0
    %1027 = vmatpush1.msra.mxu0 0.0
    %1028 = vmatprep.mubr.f32.mxu0 0.0
    %1029 = vmatmul.mubr.f32.gmra.mrb[0].mxu0 %v675
    %v1030 = vpop.f32.mrb[0].mxu0
    %v1031 = vadd.f32 0.0, %v1030
    %v1032 = vpop.f32.mrb[0].mxu0
    %1033 = vmatprep.mubr.f32.mxu0 0.0
    %1034 = vmatmul.mubr.f32.gmra.mrb[0].mxu0 %v678
    %v1035 = vpop.f32.mrb[0].mxu0
    %v1036 = vadd.f32 0.0, %v1035
    %v1037 = vpop.f32.mrb[0].mxu0
    %1038 = vdwg.mxu0
    %v1039 = vlaneseq
    %v1040 = vshrl.u32 %v1039, 7
    %v1041 = vsub.s32 6, %v1040
    %v1042 = vrot.slane %v663, %v1041
    %v1044 = vsel %vm859, %v1031, 0
    %v1047 = vsel %vm859, %v1036, 0
    %1049 = vmatprep.subr.mxu0 0.0
    %1050 = vmatpush1.msra.mxu0 %v955
    %1051 = vmatprep.subr.mxu0 0.0
    %1052 = vmatpush1.msra.mxu0 %v956
    %1053 = vmatprep.subr.mxu0 0.0
    %1054 = vmatpush1.msra.mxu0 %v957
    %1055 = vmatprep.subr.mxu0 0.0
    %1056 = vmatpush1.msra.mxu0 %v958
    %1057 = vmatprep.subr.mxu0 0.0
    %1058 = vmatpush1.msra.mxu0 0.0
    %1059 = vmatprep.subr.mxu0 0.0
    %1060 = vmatpush1.msra.mxu0 0.0
    %1061 = vmatprep.subr.mxu0 0.0
    %1062 = vmatpush1.msra.mxu0 0.0
    %1063 = vmatprep.subr.mxu0 0.0
    %1064 = vmatpush1.msra.mxu0 0.0
    %1065 = vmatprep.subr.mxu0 0.0
    %1066 = vmatpush1.msra.mxu0 0.0
    %1067 = vmatprep.subr.mxu0 0.0
    %1068 = vmatpush1.msra.mxu0 0.0
    %1069 = vmatprep.subr.mxu0 0.0
    %1070 = vmatpush1.msra.mxu0 0.0
    %1071 = vmatprep.subr.mxu0 0.0
    %1072 = vmatpush1.msra.mxu0 0.0
    %1073 = vmatprep.subr.mxu0 0.0
    %1074 = vmatpush1.msra.mxu0 0.0
    %1075 = vmatprep.subr.mxu0 0.0
    %1076 = vmatpush1.msra.mxu0 0.0
    %1077 = vmatprep.subr.mxu0 0.0
    %1078 = vmatpush1.msra.mxu0 0.0
    %1079 = vmatprep.subr.mxu0 0.0
    %1080 = vmatpush1.msra.mxu0 0.0
    %1081 = vmatprep.subr.mxu0 0.0
    %1082 = vmatpush1.msra.mxu0 0.0
    %1083 = vmatprep.subr.mxu0 0.0
    %1084 = vmatpush1.msra.mxu0 0.0
    %1085 = vmatprep.subr.mxu0 0.0
    %1086 = vmatpush1.msra.mxu0 0.0
    %1087 = vmatprep.subr.mxu0 0.0
    %1088 = vmatpush1.msra.mxu0 0.0
    %1089 = vmatprep.subr.mxu0 0.0
    %1090 = vmatpush1.msra.mxu0 0.0
    %1091 = vmatprep.subr.mxu0 0.0
    %1092 = vmatpush1.msra.mxu0 0.0
    %1093 = vmatprep.subr.mxu0 0.0
    %1094 = vmatpush1.msra.mxu0 0.0
    %1095 = vmatprep.subr.mxu0 0.0
    %1096 = vmatpush1.msra.mxu0 0.0
    %1097 = vmatprep.subr.mxu0 0.0
    %1098 = vmatpush1.msra.mxu0 0.0
    %1099 = vmatprep.subr.mxu0 0.0
    %1100 = vmatpush1.msra.mxu0 0.0
    %1101 = vmatprep.subr.mxu0 0.0
    %1102 = vmatpush1.msra.mxu0 0.0
    %1103 = vmatprep.subr.mxu0 0.0
    %1104 = vmatpush1.msra.mxu0 0.0
    %1105 = vmatprep.subr.mxu0 0.0
    %1106 = vmatpush1.msra.mxu0 0.0
    %1107 = vmatprep.subr.mxu0 0.0
    %1108 = vmatpush1.msra.mxu0 0.0
    %1109 = vmatprep.subr.mxu0 0.0
    %1110 = vmatpush1.msra.mxu0 0.0
    %1111 = vmatprep.subr.mxu0 0.0
    %1112 = vmatpush1.msra.mxu0 0.0
    %1113 = vmatprep.mubr.f32.mxu0 0.0
    %1114 = vmatmul.mubr.f32.gmra.mrb[0].mxu0 %v1044
    %v1115 = vpop.f32.mrb[0].mxu0
    %v1116 = vadd.f32 %v1042, %v1115
    %v1117 = vpop.f32.mrb[0].mxu0
    %1118 = vmatprep.mubr.f32.mxu0 0.0
    %1119 = vmatmul.mubr.f32.gmra.mrb[0].mxu0 %v1047
    %v1120 = vpop.f32.mrb[0].mxu0
    %v1121 = vadd.f32 %v1042, %v1120
    %v1122 = vpop.f32.mrb[0].mxu0
    %1123 = vdwg.mxu0
    %v1124 = vmax.f32 %v1116, 0.0
    %v1125 = vmax.f32 %v1121, 0.0
    %v1126 = vlaneseq
    %v1127 = vshrl.u32 %v1126, 7
    %v1128 = vsub.s32 7, %v1127
    %v1129 = vrot.slane %v663, %v1128
    %v1130 = vmul.f32 %v1124, %v1129
    %v1131 = vmul.f32 %v1125, %v1129
    %v1132 = vlaneseq
    %v1133 = vshrl.u32 %v1132, 7
    %v1134 = vsub.s32 0, %v1133
    %v1135 = vrot.slane %v664, %v1134
    %v1136 = vadd.f32 %v1130, %v1135
    %v1137 = vadd.f32 %v1131, %v1135
    %v1138 = vlaneseq
    %v1139 = vshrl.u32 %v1138, 7
    %v1140 = vsub.s32 1, %v1139
    %v1141 = vrot.slane %v664, %v1140
    %v1143 = vsel %vm859, %v1136, 0
    %v1146 = vsel %vm859, %v1137, 0
    %1148 = vmatprep.subr.mxu0 0.0
    %1149 = vmatpush1.msra.mxu0 %v960
    %1150 = vmatprep.subr.mxu0 0.0
    %1151 = vmatpush1.msra.mxu0 %v961
    %1152 = vmatprep.subr.mxu0 0.0
    %1153 = vmatpush1.msra.mxu0 %v962
    %1154 = vmatprep.subr.mxu0 0.0
    %1155 = vmatpush1.msra.mxu0 %v963
    %1156 = vmatprep.subr.mxu0 0.0
    %1157 = vmatpush1.msra.mxu0 0.0
    %1158 = vmatprep.subr.mxu0 0.0
    %1159 = vmatpush1.msra.mxu0 0.0
    %1160 = vmatprep.subr.mxu0 0.0
    %1161 = vmatpush1.msra.mxu0 0.0
    %1162 = vmatprep.subr.mxu0 0.0
    %1163 = vmatpush1.msra.mxu0 0.0
    %1164 = vmatprep.subr.mxu0 0.0
    %1165 = vmatpush1.msra.mxu0 0.0
    %1166 = vmatprep.subr.mxu0 0.0
    %1167 = vmatpush1.msra.mxu0 0.0
    %1168 = vmatprep.subr.mxu0 0.0
    %1169 = vmatpush1.msra.mxu0 0.0
    %1170 = vmatprep.subr.mxu0 0.0
    %1171 = vmatpush1.msra.mxu0 0.0
    %1172 = vmatprep.subr.mxu0 0.0
    %1173 = vmatpush1.msra.mxu0 0.0
    %1174 = vmatprep.subr.mxu0 0.0
    %1175 = vmatpush1.msra.mxu0 0.0
    %1176 = vmatprep.subr.mxu0 0.0
    %1177 = vmatpush1.msra.mxu0 0.0
    %1178 = vmatprep.subr.mxu0 0.0
    %1179 = vmatpush1.msra.mxu0 0.0
    %1180 = vmatprep.subr.mxu0 0.0
    %1181 = vmatpush1.msra.mxu0 0.0
    %1182 = vmatprep.subr.mxu0 0.0
    %1183 = vmatpush1.msra.mxu0 0.0
    %1184 = vmatprep.subr.mxu0 0.0
    %1185 = vmatpush1.msra.mxu0 0.0
    %1186 = vmatprep.subr.mxu0 0.0
    %1187 = vmatpush1.msra.mxu0 0.0
    %1188 = vmatprep.subr.mxu0 0.0
    %1189 = vmatpush1.msra.mxu0 0.0
    %1190 = vmatprep.subr.mxu0 0.0
    %1191 = vmatpush1.msra.mxu0 0.0
    %1192 = vmatprep.subr.mxu0 0.0
    %1193 = vmatpush1.msra.mxu0 0.0
    %1194 = vmatprep.subr.mxu0 0.0
    %1195 = vmatpush1.msra.mxu0 0.0
    %1196 = vmatprep.subr.mxu0 0.0
    %1197 = vmatpush1.msra.mxu0 0.0
    %1198 = vmatprep.subr.mxu0 0.0
    %1199 = vmatpush1.msra.mxu0 0.0
    %1200 = vmatprep.subr.mxu0 0.0
    %1201 = vmatpush1.msra.mxu0 0.0
    %1202 = vmatprep.subr.mxu0 0.0
    %1203 = vmatpush1.msra.mxu0 0.0
    %1204 = vmatprep.subr.mxu0 0.0
    %1205 = vmatpush1.msra.mxu0 0.0
    %1206 = vmatprep.subr.mxu0 0.0
    %1207 = vmatpush1.msra.mxu0 0.0
    %1208 = vmatprep.subr.mxu0 0.0
    %1209 = vmatpush1.msra.mxu0 0.0
    %1210 = vmatprep.subr.mxu0 0.0
    %1211 = vmatpush1.msra.mxu0 0.0
    %1212 = vmatprep.mubr.f32.mxu0 0.0
    %1213 = vmatmul.mubr.f32.gmra.mrb[0].mxu0 %v1143
    %v1214 = vpop.f32.mrb[0].mxu0
    %v1215 = vadd.f32 %v1141, %v1214
    %v1216 = vpop.f32.mrb[0].mxu0
    %1217 = vmatprep.mubr.f32.mxu0 0.0
    %1218 = vmatmul.mubr.f32.gmra.mrb[0].mxu0 %v1146
    %v1219 = vpop.f32.mrb[0].mxu0
    %v1220 = vadd.f32 %v1141, %v1219
    %v1221 = vpop.f32.mrb[0].mxu0
    %1222 = vdwg.mxu0
    %v1223 = vmax.f32 %v1215, 0.0
    %v1224 = vmax.f32 %v1220, 0.0
    %v1225 = vlaneseq
    %v1226 = vshrl.u32 %v1225, 7
    %v1227 = vsub.s32 2, %v1226
    %v1228 = vrot.slane %v664, %v1227
    %v1229 = vmul.f32 %v1223, %v1228
    %v1230 = vmul.f32 %v1224, %v1228
    %v1231 = vlaneseq
    %v1232 = vshrl.u32 %v1231, 7
    %v1233 = vsub.s32 3, %v1232
    %v1234 = vrot.slane %v664, %v1233
    %v1235 = vadd.f32 %v1229, %v1234
    %v1236 = vadd.f32 %v1230, %v1234
    %s1237 = scalar_lea.vmem %s5, 32
    %v1238 = vld [vmem:[%s1237] sm:$0xff]
    %v1239 = vld [vmem:[%s1237 + $0x8] sm:$0xff]
    %v1240 = vld [vmem:[%s1237 + $0x10] sm:$0xff]
    %v1241 = vld [vmem:[%s1237 + $0x18] sm:$0xff]
    %s1242 = scalar_lea.vmem %s5, 128
    %v1243 = vld [vmem:[%s1242] sm:$0xff]
    %v1244 = vld [vmem:[%s1242 + $0x8] sm:$0xff]
    %v1245 = vld [vmem:[%s1242 + $0x10] sm:$0xff]
    %v1246 = vld [vmem:[%s1242 + $0x18] sm:$0xff]
    %1247 = vmatprep.subr.mxu0 0.0
    %1248 = vmatpush1.msra.mxu0 %v1235
    %1249 = vmatprep.subr.mxu0 0.0
    %1250 = vmatpush1.msra.mxu0 %v1236
    %1251 = vmatprep.subr.mxu0 0.0
    %1252 = vmatpush1.msra.mxu0 0.0
    %1253 = vmatprep.subr.mxu0 0.0
    %1254 = vmatpush1.msra.mxu0 0.0
    %1255 = vmatprep.subr.mxu0 0.0
    %1256 = vmatpush1.msra.mxu0 0.0
    %1257 = vmatprep.subr.mxu0 0.0
    %1258 = vmatpush1.msra.mxu0 0.0
    %1259 = vmatprep.subr.mxu0 0.0
    %1260 = vmatpush1.msra.mxu0 0.0
    %1261 = vmatprep.subr.mxu0 0.0
    %1262 = vmatpush1.msra.mxu0 0.0
    %1263 = vmatprep.subr.mxu0 0.0
    %1264 = vmatpush1.msra.mxu0 0.0
    %1265 = vmatprep.subr.mxu0 0.0
    %1266 = vmatpush1.msra.mxu0 0.0
    %1267 = vmatprep.subr.mxu0 0.0
    %1268 = vmatpush1.msra.mxu0 0.0
    %1269 = vmatprep.subr.mxu0 0.0
    %1270 = vmatpush1.msra.mxu0 0.0
    %1271 = vmatprep.subr.mxu0 0.0
    %1272 = vmatpush1.msra.mxu0 0.0
    %1273 = vmatprep.subr.mxu0 0.0
    %1274 = vmatpush1.msra.mxu0 0.0
    %1275 = vmatprep.subr.mxu0 0.0
    %1276 = vmatpush1.msra.mxu0 0.0
    %1277 = vmatprep.subr.mxu0 0.0
    %1278 = vmatpush1.msra.mxu0 0.0
    %1279 = vmatprep.subr.mxu0 0.0
    %1280 = vmatpush1.msra.mxu0 0.0
    %1281 = vmatprep.subr.mxu0 0.0
    %1282 = vmatpush1.msra.mxu0 0.0
    %1283 = vmatprep.subr.mxu0 0.0
    %1284 = vmatpush1.msra.mxu0 0.0
    %1285 = vmatprep.subr.mxu0 0.0
    %1286 = vmatpush1.msra.mxu0 0.0
    %1287 = vmatprep.subr.mxu0 0.0
    %1288 = vmatpush1.msra.mxu0 0.0
    %1289 = vmatprep.subr.mxu0 0.0
    %1290 = vmatpush1.msra.mxu0 0.0
    %1291 = vmatprep.subr.mxu0 0.0
    %1292 = vmatpush1.msra.mxu0 0.0
    %1293 = vmatprep.subr.mxu0 0.0
    %1294 = vmatpush1.msra.mxu0 0.0
    %1295 = vmatprep.subr.mxu0 0.0
    %1296 = vmatpush1.msra.mxu0 0.0
    %1297 = vmatprep.subr.mxu0 0.0
    %1298 = vmatpush1.msra.mxu0 0.0
    %1299 = vmatprep.subr.mxu0 0.0
    %1300 = vmatpush1.msra.mxu0 0.0
    %1301 = vmatprep.subr.mxu0 0.0
    %1302 = vmatpush1.msra.mxu0 0.0
    %1303 = vmatprep.subr.mxu0 0.0
    %1304 = vmatpush1.msra.mxu0 0.0
    %1305 = vmatprep.subr.mxu0 0.0
    %1306 = vmatpush1.msra.mxu0 0.0
    %1307 = vmatprep.subr.mxu0 0.0
    %1308 = vmatpush1.msra.mxu0 0.0
    %1309 = vmatprep.subr.mxu0 0.0
    %1310 = vmatpush1.msra.mxu0 0.0
    %1311 = vmatprep.mubr.f32.mxu0 0.0
    %1312 = vmatmul.mubr.f32.gmra.mrb[0].mxu0 %v675
    %v1313 = vpop.f32.mrb[0].mxu0
    %v1314 = vadd.f32 0.0, %v1313
    %v1315 = vpop.f32.mrb[0].mxu0
    %1316 = vmatprep.mubr.f32.mxu0 0.0
    %1317 = vmatmul.mubr.f32.gmra.mrb[0].mxu0 %v678
    %v1318 = vpop.f32.mrb[0].mxu0
    %v1319 = vadd.f32 0.0, %v1318
    %v1320 = vpop.f32.mrb[0].mxu0
    %1321 = vdwg.mxu0
    %v1322 = vlaneseq
    %v1323 = vshrl.u32 %v1322, 7
    %v1324 = vsub.s32 4, %v1323
    %v1325 = vrot.slane %v664, %v1324
    %v1327 = vsel %vm859, %v1314, 0
    %v1330 = vsel %vm859, %v1319, 0
    %1332 = vmatprep.subr.mxu0 0.0
    %1333 = vmatpush1.msra.mxu0 %v1238
    %1334 = vmatprep.subr.mxu0 0.0
    %1335 = vmatpush1.msra.mxu0 %v1239
    %1336 = vmatprep.subr.mxu0 0.0
    %1337 = vmatpush1.msra.mxu0 %v1240
    %1338 = vmatprep.subr.mxu0 0.0
    %1339 = vmatpush1.msra.mxu0 %v1241
    %1340 = vmatprep.subr.mxu0 0.0
    %1341 = vmatpush1.msra.mxu0 0.0
    %1342 = vmatprep.subr.mxu0 0.0
    %1343 = vmatpush1.msra.mxu0 0.0
    %1344 = vmatprep.subr.mxu0 0.0
    %1345 = vmatpush1.msra.mxu0 0.0
    %1346 = vmatprep.subr.mxu0 0.0
    %1347 = vmatpush1.msra.mxu0 0.0
    %1348 = vmatprep.subr.mxu0 0.0
    %1349 = vmatpush1.msra.mxu0 0.0
    %1350 = vmatprep.subr.mxu0 0.0
    %1351 = vmatpush1.msra.mxu0 0.0
    %1352 = vmatprep.subr.mxu0 0.0
    %1353 = vmatpush1.msra.mxu0 0.0
    %1354 = vmatprep.subr.mxu0 0.0
    %1355 = vmatpush1.msra.mxu0 0.0
    %1356 = vmatprep.subr.mxu0 0.0
    %1357 = vmatpush1.msra.mxu0 0.0
    %1358 = vmatprep.subr.mxu0 0.0
    %1359 = vmatpush1.msra.mxu0 0.0
    %1360 = vmatprep.subr.mxu0 0.0
    %1361 = vmatpush1.msra.mxu0 0.0
    %1362 = vmatprep.subr.mxu0 0.0
    %1363 = vmatpush1.msra.mxu0 0.0
    %1364 = vmatprep.subr.mxu0 0.0
    %1365 = vmatpush1.msra.mxu0 0.0
    %1366 = vmatprep.subr.mxu0 0.0
    %1367 = vmatpush1.msra.mxu0 0.0
    %1368 = vmatprep.subr.mxu0 0.0
    %1369 = vmatpush1.msra.mxu0 0.0
    %1370 = vmatprep.subr.mxu0 0.0
    %1371 = vmatpush1.msra.mxu0 0.0
    %1372 = vmatprep.subr.mxu0 0.0
    %1373 = vmatpush1.msra.mxu0 0.0
    %1374 = vmatprep.subr.mxu0 0.0
    %1375 = vmatpush1.msra.mxu0 0.0
    %1376 = vmatprep.subr.mxu0 0.0
    %1377 = vmatpush1.msra.mxu0 0.0
    %1378 = vmatprep.subr.mxu0 0.0
    %1379 = vmatpush1.msra.mxu0 0.0
    %1380 = vmatprep.subr.mxu0 0.0
    %1381 = vmatpush1.msra.mxu0 0.0
    %1382 = vmatprep.subr.mxu0 0.0
    %1383 = vmatpush1.msra.mxu0 0.0
    %1384 = vmatprep.subr.mxu0 0.0
    %1385 = vmatpush1.msra.mxu0 0.0
    %1386 = vmatprep.subr.mxu0 0.0
    %1387 = vmatpush1.msra.mxu0 0.0
    %1388 = vmatprep.subr.mxu0 0.0
    %1389 = vmatpush1.msra.mxu0 0.0
    %1390 = vmatprep.subr.mxu0 0.0
    %1391 = vmatpush1.msra.mxu0 0.0
    %1392 = vmatprep.subr.mxu0 0.0
    %1393 = vmatpush1.msra.mxu0 0.0
    %1394 = vmatprep.subr.mxu0 0.0
    %1395 = vmatpush1.msra.mxu0 0.0
    %1396 = vmatprep.mubr.f32.mxu0 0.0
    %1397 = vmatmul.mubr.f32.gmra.mrb[0].mxu0 %v1327
    %v1398 = vpop.f32.mrb[0].mxu0
    %v1399 = vadd.f32 %v1325, %v1398
    %v1400 = vpop.f32.mrb[0].mxu0
    %1401 = vmatprep.mubr.f32.mxu0 0.0
    %1402 = vmatmul.mubr.f32.gmra.mrb[0].mxu0 %v1330
    %v1403 = vpop.f32.mrb[0].mxu0
    %v1404 = vadd.f32 %v1325, %v1403
    %v1405 = vpop.f32.mrb[0].mxu0
    %1406 = vdwg.mxu0
    %v1407 = vmax.f32 %v1399, 0.0
    %v1408 = vmax.f32 %v1404, 0.0
    %v1409 = vlaneseq
    %v1410 = vshrl.u32 %v1409, 7
    %v1411 = vsub.s32 5, %v1410
    %v1412 = vrot.slane %v664, %v1411
    %v1413 = vmul.f32 %v1407, %v1412
    %v1414 = vmul.f32 %v1408, %v1412
    %v1415 = vlaneseq
    %v1416 = vshrl.u32 %v1415, 7
    %v1417 = vsub.s32 6, %v1416
    %v1418 = vrot.slane %v664, %v1417
    %v1419 = vadd.f32 %v1413, %v1418
    %v1420 = vadd.f32 %v1414, %v1418
    %v1421 = vlaneseq
    %v1422 = vshrl.u32 %v1421, 7
    %v1423 = vsub.s32 7, %v1422
    %v1424 = vrot.slane %v664, %v1423
    %v1426 = vsel %vm859, %v1419, 0
    %v1429 = vsel %vm859, %v1420, 0
    %1431 = vmatprep.subr.mxu0 0.0
    %1432 = vmatpush1.msra.mxu0 %v1243
    %1433 = vmatprep.subr.mxu0 0.0
    %1434 = vmatpush1.msra.mxu0 %v1244
    %1435 = vmatprep.subr.mxu0 0.0
    %1436 = vmatpush1.msra.mxu0 %v1245
    %1437 = vmatprep.subr.mxu0 0.0
    %1438 = vmatpush1.msra.mxu0 %v1246
    %1439 = vmatprep.subr.mxu0 0.0
    %1440 = vmatpush1.msra.mxu0 0.0
    %1441 = vmatprep.subr.mxu0 0.0
    %1442 = vmatpush1.msra.mxu0 0.0
    %1443 = vmatprep.subr.mxu0 0.0
    %1444 = vmatpush1.msra.mxu0 0.0
    %1445 = vmatprep.subr.mxu0 0.0
    %1446 = vmatpush1.msra.mxu0 0.0
    %1447 = vmatprep.subr.mxu0 0.0
    %1448 = vmatpush1.msra.mxu0 0.0
    %1449 = vmatprep.subr.mxu0 0.0
    %1450 = vmatpush1.msra.mxu0 0.0
    %1451 = vmatprep.subr.mxu0 0.0
    %1452 = vmatpush1.msra.mxu0 0.0
    %1453 = vmatprep.subr.mxu0 0.0
    %1454 = vmatpush1.msra.mxu0 0.0
    %1455 = vmatprep.subr.mxu0 0.0
    %1456 = vmatpush1.msra.mxu0 0.0
    %1457 = vmatprep.subr.mxu0 0.0
    %1458 = vmatpush1.msra.mxu0 0.0
    %1459 = vmatprep.subr.mxu0 0.0
    %1460 = vmatpush1.msra.mxu0 0.0
    %1461 = vmatprep.subr.mxu0 0.0
    %1462 = vmatpush1.msra.mxu0 0.0
    %1463 = vmatprep.subr.mxu0 0.0
    %1464 = vmatpush1.msra.mxu0 0.0
    %1465 = vmatprep.subr.mxu0 0.0
    %1466 = vmatpush1.msra.mxu0 0.0
    %1467 = vmatprep.subr.mxu0 0.0
    %1468 = vmatpush1.msra.mxu0 0.0
    %1469 = vmatprep.subr.mxu0 0.0
    %1470 = vmatpush1.msra.mxu0 0.0
    %1471 = vmatprep.subr.mxu0 0.0
    %1472 = vmatpush1.msra.mxu0 0.0
    %1473 = vmatprep.subr.mxu0 0.0
    %1474 = vmatpush1.msra.mxu0 0.0
    %1475 = vmatprep.subr.mxu0 0.0
    %1476 = vmatpush1.msra.mxu0 0.0
    %1477 = vmatprep.subr.mxu0 0.0
    %1478 = vmatpush1.msra.mxu0 0.0
    %1479 = vmatprep.subr.mxu0 0.0
    %1480 = vmatpush1.msra.mxu0 0.0
    %1481 = vmatprep.subr.mxu0 0.0
    %1482 = vmatpush1.msra.mxu0 0.0
    %1483 = vmatprep.subr.mxu0 0.0
    %1484 = vmatpush1.msra.mxu0 0.0
    %1485 = vmatprep.subr.mxu0 0.0
    %1486 = vmatpush1.msra.mxu0 0.0
    %1487 = vmatprep.subr.mxu0 0.0
    %1488 = vmatpush1.msra.mxu0 0.0
    %1489 = vmatprep.subr.mxu0 0.0
    %1490 = vmatpush1.msra.mxu0 0.0
    %1491 = vmatprep.subr.mxu0 0.0
    %1492 = vmatpush1.msra.mxu0 0.0
    %1493 = vmatprep.subr.mxu0 0.0
    %1494 = vmatpush1.msra.mxu0 0.0
    %1495 = vmatprep.mubr.f32.mxu0 0.0
    %1496 = vmatmul.mubr.f32.gmra.mrb[0].mxu0 %v1426
    %v1497 = vpop.f32.mrb[0].mxu0
    %v1498 = vadd.f32 %v1424, %v1497
    %v1499 = vpop.f32.mrb[0].mxu0
    %1500 = vmatprep.mubr.f32.mxu0 0.0
    %1501 = vmatmul.mubr.f32.gmra.mrb[0].mxu0 %v1429
    %v1502 = vpop.f32.mrb[0].mxu0
    %v1503 = vadd.f32 %v1424, %v1502
    %v1504 = vpop.f32.mrb[0].mxu0
    %1505 = vdwg.mxu0
    %v1506 = vmax.f32 %v1498, 0.0
    %v1507 = vmax.f32 %v1503, 0.0
    %v1508 = vlaneseq
    %v1509 = vshrl.u32 %v1508, 7
    %v1510 = vsub.s32 0, %v1509
    %v1511 = vrot.slane %v665, %v1510
    %v1512 = vmul.f32 %v1506, %v1511
    %v1513 = vmul.f32 %v1507, %v1511
    %v1514 = vlaneseq
    %v1515 = vshrl.u32 %v1514, 7
    %v1516 = vsub.s32 1, %v1515
    %v1517 = vrot.slane %v665, %v1516
    %v1518 = vadd.f32 %v1512, %v1517
    %v1519 = vadd.f32 %v1513, %v1517
    %v1520 = vld [vmem:[%s3] sm:$0x1]
    %v1521 = vlaneseq
    %v1522 = vshrl.u32 %v1521, 7
    %v1523 = vsub.s32 0, %v1522
    %v1524 = vrot.slane %v1520, %v1523
    %vm1525 = vcmp.eq.s32.totalorder %v35, %v1524
    %v1526 = vsel %vm1525, 1, 0
    %v1527 = vcvt.s32.f32 %v1526
    %v1529 = vsel %vm45, %v1527, 0
    %1531 = vmatprep.subr.mxu0 0.0
    %1532 = vmatpush1.msra.mxu0 %v1518
    %1533 = vmatprep.subr.mxu0 0.0
    %1534 = vmatpush1.msra.mxu0 %v1519
    %1535 = vmatprep.subr.mxu0 0.0
    %1536 = vmatpush1.msra.mxu0 0.0
    %1537 = vmatprep.subr.mxu0 0.0
    %1538 = vmatpush1.msra.mxu0 0.0
    %1539 = vmatprep.subr.mxu0 0.0
    %1540 = vmatpush1.msra.mxu0 0.0
    %1541 = vmatprep.subr.mxu0 0.0
    %1542 = vmatpush1.msra.mxu0 0.0
    %1543 = vmatprep.subr.mxu0 0.0
    %1544 = vmatpush1.msra.mxu0 0.0
    %1545 = vmatprep.subr.mxu0 0.0
    %1546 = vmatpush1.msra.mxu0 0.0
    %1547 = vmatprep.subr.mxu0 0.0
    %1548 = vmatpush1.msra.mxu0 0.0
    %1549 = vmatprep.subr.mxu0 0.0
    %1550 = vmatpush1.msra.mxu0 0.0
    %1551 = vmatprep.subr.mxu0 0.0
    %1552 = vmatpush1.msra.mxu0 0.0
    %1553 = vmatprep.subr.mxu0 0.0
    %1554 = vmatpush1.msra.mxu0 0.0
    %1555 = vmatprep.subr.mxu0 0.0
    %1556 = vmatpush1.msra.mxu0 0.0
    %1557 = vmatprep.subr.mxu0 0.0
    %1558 = vmatpush1.msra.mxu0 0.0
    %1559 = vmatprep.subr.mxu0 0.0
    %1560 = vmatpush1.msra.mxu0 0.0
    %1561 = vmatprep.subr.mxu0 0.0
    %1562 = vmatpush1.msra.mxu0 0.0
    %1563 = vmatprep.subr.mxu0 0.0
    %1564 = vmatpush1.msra.mxu0 0.0
    %1565 = vmatprep.subr.mxu0 0.0
    %1566 = vmatpush1.msra.mxu0 0.0
    %1567 = vmatprep.subr.mxu0 0.0
    %1568 = vmatpush1.msra.mxu0 0.0
    %1569 = vmatprep.subr.mxu0 0.0
    %1570 = vmatpush1.msra.mxu0 0.0
    %1571 = vmatprep.subr.mxu0 0.0
    %1572 = vmatpush1.msra.mxu0 0.0
    %1573 = vmatprep.subr.mxu0 0.0
    %1574 = vmatpush1.msra.mxu0 0.0
    %1575 = vmatprep.subr.mxu0 0.0
    %1576 = vmatpush1.msra.mxu0 0.0
    %1577 = vmatprep.subr.mxu0 0.0
    %1578 = vmatpush1.msra.mxu0 0.0
    %1579 = vmatprep.subr.mxu0 0.0
    %1580 = vmatpush1.msra.mxu0 0.0
    %1581 = vmatprep.subr.mxu0 0.0
    %1582 = vmatpush1.msra.mxu0 0.0
    %1583 = vmatprep.subr.mxu0 0.0
    %1584 = vmatpush1.msra.mxu0 0.0
    %1585 = vmatprep.subr.mxu0 0.0
    %1586 = vmatpush1.msra.mxu0 0.0
    %1587 = vmatprep.subr.mxu0 0.0
    %1588 = vmatpush1.msra.mxu0 0.0
    %1589 = vmatprep.subr.mxu0 0.0
    %1590 = vmatpush1.msra.mxu0 0.0
    %1591 = vmatprep.subr.mxu0 0.0
    %1592 = vmatpush1.msra.mxu0 0.0
    %1593 = vmatprep.subr.mxu0 0.0
    %1594 = vmatpush1.msra.mxu0 0.0
    %1595 = vmatprep.mubr.f32.mxu0 0.0
    %1596 = vmatmul.mubr.f32.gmra.mrb[0].mxu0 %v1529
    %v1597 = vpop.f32.mrb[0].mxu0
    %v1598 = vadd.f32 0.0, %v1597
    %v1599 = vpop.f32.mrb[0].mxu0
    %1600 = vdwg.mxu0
    %v1601 = vld [vmem:[%s7] sm:$0xff]
    %v1602 = vld [vmem:[%s7 + $0x8] sm:$0xff]
    %v1603 = vld [vmem:[%s7 + $0x10] sm:$0xff]
    %v1604 = vld [vmem:[%s7 + $0x18] sm:$0xff]
    %v1605 = vld [vmem:[%s8] sm:$0x1]
    %v1607 = vlaneseq
    %v1608 = vshrl.u32 %v1607, 7
    %v1609 = vsub.s32 0, %v1608
    %v1610 = vrot.slane %v1605, %v1609
    %v1613 = vsel %vm859, %v1598, 0
    %1615 = vmatprep.subr.mxu0 0.0
    %1616 = vmatpush1.msra.mxu0 %v1601
    %1617 = vmatprep.subr.mxu0 0.0
    %1618 = vmatpush1.msra.mxu0 %v1602
    %1619 = vmatprep.subr.mxu0 0.0
    %1620 = vmatpush1.msra.mxu0 %v1603
    %1621 = vmatprep.subr.mxu0 0.0
    %1622 = vmatpush1.msra.mxu0 %v1604
    %1623 = vmatprep.subr.mxu0 0.0
    %1624 = vmatpush1.msra.mxu0 0.0
    %1625 = vmatprep.subr.mxu0 0.0
    %1626 = vmatpush1.msra.mxu0 0.0
    %1627 = vmatprep.subr.mxu0 0.0
    %1628 = vmatpush1.msra.mxu0 0.0
    %1629 = vmatprep.subr.mxu0 0.0
    %1630 = vmatpush1.msra.mxu0 0.0
    %1631 = vmatprep.subr.mxu0 0.0
    %1632 = vmatpush1.msra.mxu0 0.0
    %1633 = vmatprep.subr.mxu0 0.0
    %1634 = vmatpush1.msra.mxu0 0.0
    %1635 = vmatprep.subr.mxu0 0.0
    %1636 = vmatpush1.msra.mxu0 0.0
    %1637 = vmatprep.subr.mxu0 0.0
    %1638 = vmatpush1.msra.mxu0 0.0
    %1639 = vmatprep.subr.mxu0 0.0
    %1640 = vmatpush1.msra.mxu0 0.0
    %1641 = vmatprep.subr.mxu0 0.0
    %1642 = vmatpush1.msra.mxu0 0.0
    %1643 = vmatprep.subr.mxu0 0.0
    %1644 = vmatpush1.msra.mxu0 0.0
    %1645 = vmatprep.subr.mxu0 0.0
    %1646 = vmatpush1.msra.mxu0 0.0
    %1647 = vmatprep.subr.mxu0 0.0
    %1648 = vmatpush1.msra.mxu0 0.0
    %1649 = vmatprep.subr.mxu0 0.0
    %1650 = vmatpush1.msra.mxu0 0.0
    %1651 = vmatprep.subr.mxu0 0.0
    %1652 = vmatpush1.msra.mxu0 0.0
    %1653 = vmatprep.subr.mxu0 0.0
    %1654 = vmatpush1.msra.mxu0 0.0
    %1655 = vmatprep.subr.mxu0 0.0
    %1656 = vmatpush1.msra.mxu0 0.0
    %1657 = vmatprep.subr.mxu0 0.0
    %1658 = vmatpush1.msra.mxu0 0.0
    %1659 = vmatprep.subr.mxu0 0.0
    %1660 = vmatpush1.msra.mxu0 0.0
    %1661 = vmatprep.subr.mxu0 0.0
    %1662 = vmatpush1.msra.mxu0 0.0
    %1663 = vmatprep.subr.mxu0 0.0
    %1664 = vmatpush1.msra.mxu0 0.0
    %1665 = vmatprep.subr.mxu0 0.0
    %1666 = vmatpush1.msra.mxu0 0.0
    %1667 = vmatprep.subr.mxu0 0.0
    %1668 = vmatpush1.msra.mxu0 0.0
    %1669 = vmatprep.subr.mxu0 0.0
    %1670 = vmatpush1.msra.mxu0 0.0
    %1671 = vmatprep.subr.mxu0 0.0
    %1672 = vmatpush1.msra.mxu0 0.0
    %1673 = vmatprep.subr.mxu0 0.0
    %1674 = vmatpush1.msra.mxu0 0.0
    %1675 = vmatprep.subr.mxu0 0.0
    %1676 = vmatpush1.msra.mxu0 0.0
    %1677 = vmatprep.subr.mxu0 0.0
    %1678 = vmatpush1.msra.mxu0 0.0
    %1679 = vmatprep.mubr.f32.mxu0 0.0
    %1680 = vmatmul.mubr.f32.gmra.mrb[0].mxu0 %v1613
    %v1681 = vpop.f32.mrb[0].mxu0
    %v1682 = vadd.f32 %v1610, %v1681
    %v1683 = vpop.f32.mrb[0].mxu0
    %1684 = vdwg.mxu0
    %vm1685 = vcmask 17408
    %1686 = vst.msk [vmem:[#allocation3] sm:$0x3] %vm1685, %v1682
    // Predicated region
    $region38: #{tpu_custom_call.1} parent=1 // pred_check
      _
    $region39: #{tpu_custom_call.1} parent=1 // pred_check_branch
      %1688 = sbr.rel (0) target = $region41
    $region40: #{tpu_custom_call.1} parent=1 // pred_region
      %s1690 = ssub.s32 32, 32
      %1691 = vsyncadd [#allocation4], %s1690
      %s1693 = sshll.u32 [#allocation3], 4
      %s1694 = int_to_ptr.vmem [resolvable:$true] %s1693
      %1696 = dma.vmem_to_hbm [thread:$0]  %s1694, 32, %s9, [#allocation4]
    $region41: #{tpu_custom_call.1} parent=1 // pred_fallthru
      _
    // Predicated region
    $region42: #{tpu_custom_call.1} parent=1 // pred_check
      _
    $region43: #{tpu_custom_call.1} parent=1 // pred_check_branch
      %1698 = sbr.rel (0) target = $region45
    $region44: #{tpu_custom_call.1} parent=1 // pred_region
      %1699 = dma.done [#allocation4], 32
    $region45: #{tpu_custom_call.1} parent=1 // pred_fallthru
      _
    %1700 = vsyncpa [#allocation4], 1

</llo_original>
